<compile_context>
chip_gen: v7x
topology: tpu7x:2x2x1
jax: 0.10.0
libtpu: 0.0.40
codegen_flags: <defaults>
</compile_context>

<pallas_src>
import functools
import numpy as np

import jax
import jax.numpy as jnp
from jax.experimental import pallas as pl
from jax.experimental.pallas import tpu as pltpu


def _round_up(x: int, m: int) -> int:
    return ((x + m - 1) // m) * m


def _cdiv(a: int, b: int) -> int:
    return -(-a // b)


def _tpu_vmem_capacity_bytes() -> int:
    """Per-core VMEM capacity; falls back to the smallest (v7x per-TC) value."""
    try:
        return int(pltpu.get_tpu_info().vmem_capacity_bytes)
    except Exception:
        return 64 * 1024 * 1024


def _est_vmem_bytes(tb: int, d: int, f_pad: int, nf: int) -> int:
    """Per-grid-step VMEM footprint: double-buffered streaming blocks,
    single-buffered resident weights, AND the stacked-argmax intermediates
    (previously under-counted)."""
    stream = (tb * d * 2          # x tile (bf16)
              + tb * f_pad * 2    # targets tile (bf16)
              + tb * f_pad * 4    # logits out tile (f32)
              + tb * f_pad * 1    # preds out tile (int8)
              + 8 * 128 * 4)      # packed scalars tile
    dbuf = 2 * stream                                   # pipeline double-buffering
    resident = d * f_pad * 2 + 2 * f_pad * 4            # W (1 buffer) + bias + inv_w
    live = (3 * nf + 4) * tb * f_pad * 4                # seg/is_max/(col==idx) + f32 temps
    return dbuf + resident + live


def _pick_batch_tile(batch: int, d: int, f_pad: int, nf: int,
                     budget_bytes: int, tb_cap: int) -> int:
    if batch <= 32:
        # Single block whose dims equal the full array dims (always a legal layout).
        return batch
    # Multiple of 32 (int8 preds / bf16 x sublane packing); prefer >= 2 grid
    # steps so both v7x TensorCores get work.
    tb = min(tb_cap, _round_up(_cdiv(batch, 2), 32))
    while tb > 32 and _est_vmem_bytes(tb, d, f_pad, nf) > budget_bytes:
        tb = _round_up(tb // 2, 32)
    return tb


def make_clf_kernel(n_fillers_per_role, f_valid, f_pad, tb, batch_size):
    """Build the Pallas kernel. All factor offsets are baked in as Python ints
    (scalars only -- no captured array constants)."""
    offs = [0]
    for n in n_fillers_per_role:
        offs.append(offs[-1] + int(n))
    nf = len(n_fillers_per_role)

    def kernel(x_ref, w_ref, b_ref, t_ref, invw_ref,
               logits_ref, preds_ref, scal_ref):
        i = pl.program_id(0)

        # ---- Linear head on the MXU: bf16 operands, f32 accumulate. ----
        # NOTE: intentionally lower precision than torch's f32 nn.Linear.
        logits = jnp.dot(x_ref[...], w_ref[...],
                         preferred_element_type=jnp.float32) + b_ref[...]
        logits_ref[...] = logits                       # [TB, F_pad] f32 (lane-dense)

        # ---- validity masks (feature-pad columns / tail-block rows). ----
        col = jax.lax.broadcasted_iota(jnp.int32, (tb, f_pad), 1)
        row = jax.lax.broadcasted_iota(jnp.int32, (tb, f_pad), 0) + i * tb
        col_valid = col < f_valid
        row_valid = row < batch_size
        valid = jnp.logical_and(col_valid, row_valid)

        # Targets arrive as bf16 (exact 0/1); cast in-register and zero out
        # invalid entries so tail-block garbage can never leak into sums.
        t = jnp.where(valid, t_ref[...].astype(jnp.float32), 0.0)

        # ---- binary_cross_entropy_with_logits (stable softplus + log1p). ----
        # jnp.where (not *mask) so Inf/NaN from garbage logits in the partial
        # tail block cannot propagate via 0*Inf.
        bce = jnp.where(
            valid,
            jnp.maximum(logits, 0.0) - logits * t
            + jnp.log1p(jnp.exp(-jnp.abs(logits))),
            0.0)
        s_bce = jnp.sum(bce, keepdims=True)                          # (1,1) partial sum
        # inv_w is zero-padded AND bce is masked: pad columns contribute exactly
        # 0 to the weighted loss (keep BOTH; removing either breaks this).
        s_wbce = jnp.sum(bce * invw_ref[...], keepdims=True)         # (1,1) weighted partial

        # ---- get_preds: per-factor argmax -> one-hot, one stacked reduction. ----
        # Factor masks from iota + scalar offsets (no captured array constants).
        col3 = jax.lax.broadcasted_iota(jnp.int32, (nf, 1, f_pad), 2)
        fac3 = jax.lax.broadcasted_iota(jnp.int32, (nf, 1, f_pad), 0)
        lo3 = jnp.where(fac3 == 0, offs[0], 0)
        hi3 = jnp.where(fac3 == 0, offs[1], 0)
        for fi in range(1, nf):
            lo3 = jnp.where(fac3 == fi, offs[fi], lo3)
            hi3 = jnp.where(fac3 == fi, offs[fi + 1], hi3)
        mask3 = jnp.logical_and(col3 >= lo3, col3 < hi3)             # (nf, 1, F_pad)

        seg = jnp.where(mask3, logits[None], -jnp.inf)               # (nf, TB, F_pad)
        mx = jnp.max(seg, axis=-1, keepdims=True)                    # (nf, TB, 1)
        is_max = jnp.logical_and(seg == mx, mask3)
        # argmax = first (lowest) column index attaining the factor max.
        idx = jnp.min(jnp.where(is_max, col3, f_pad),
                      axis=-1, keepdims=True)                        # (nf, TB, 1)
        preds = jnp.sum((col3 == idx).astype(jnp.int32), axis=0)     # (TB, F_pad)
        preds_ref[...] = preds.astype(jnp.int8)                      # int8 writeback (4x less HBM)

        # ---- get_acc_logs partial sums. ----
        tgt_int = (t > 0.5).astype(jnp.int32)                        # t already masked
        hit = jnp.logical_and(preds == 1, tgt_int == 1)              # preds & (preds & mask)
        s_nfc = jnp.sum(hit.astype(jnp.float32), keepdims=True)      # (1,1)
        s_tgt = jnp.sum(t, keepdims=True)                            # (1,1)

        bad = jnp.logical_or(preds != tgt_int,
                             jnp.logical_not(row_valid)).astype(jnp.int32)
        n_bad = jnp.sum(bad, axis=1, keepdims=True)                  # (TB, 1)
        s_comb = jnp.sum((n_bad == 0).astype(jnp.float32), keepdims=True)

        # ---- pack the 5 partial scalars into one lane-dense tile. ----
        lane8 = jax.lax.broadcasted_iota(jnp.int32, (8, 128), 1)
        row8 = jax.lax.broadcasted_iota(jnp.int32, (8, 128), 0)
        r0 = row8 == 0
        packed = (jnp.where(jnp.logical_and(r0, lane8 == 0), s_bce, 0.0)
                  + jnp.where(jnp.logical_and(r0, lane8 == 1), s_wbce, 0.0)
                  + jnp.where(jnp.logical_and(r0, lane8 == 2), s_nfc, 0.0)
                  + jnp.where(jnp.logical_and(r0, lane8 == 3), s_tgt, 0.0)
                  + jnp.where(jnp.logical_and(r0, lane8 == 4), s_comb, 0.0))
        scal_ref[...] = packed[None]                                 # (1, 8, 128)

    return kernel


@functools.partial(jax.jit, static_argnames=("n_fillers_per_role", "eps"))
def base_clf_forward(latent_reps, tgts, w, b, weights,
                     n_fillers_per_role, eps=1e-4):
    n_fillers = tuple(int(n) for n in n_fillers_per_role)
    f_total = int(sum(n_fillers))
    nf = len(n_fillers)
    bsz, d = latent_reps.shape
    assert tgts.shape == (bsz, f_total)

    # NOTE: v6e/v7x MXUs are 256-wide; if F ever grows past 128, padding to a
    # multiple of 256 there helps once the matmul dominates. Irrelevant while
    # the kernel is HBM-bound.
    f_pad = _round_up(f_total, 128)

    # Generation-aware VMEM budgeting.
    phys_vmem = _tpu_vmem_capacity_bytes()
    tb_cap = 1024 if phys_vmem >= 128 * 1024 * 1024 else 512   # bigger tiles on 128 MiB parts
    budget = 14 * 1024 * 1024                                  # under v5e's 16 MiB scoped default
    vmem_limit = int(min(phys_vmem * 3 // 4, 32 * 1024 * 1024))

    tb = _pick_batch_tile(bsz, d, f_pad, nf, budget, tb_cap)
    nb = _cdiv(bsz, tb)

    # Feature-dim padding only (lane-dense stores). NO batch padding: the last
    # grid block may be partial; correctness is guarded by the in-kernel
    # row/col validity masks (garbage-safe via jnp.where).
    x_p = latent_reps.astype(jnp.bfloat16)
    w_p = jnp.pad(w.astype(jnp.bfloat16), ((0, 0), (0, f_pad - f_total)))
    bias_p = jnp.pad(jnp.reshape(b, (1, f_total)).astype(jnp.float32),
                     ((0, 0), (0, f_pad - f_total)))
    t_p = jnp.pad(tgts.astype(jnp.bfloat16), ((0, 0), (0, f_pad - f_total)))
    inv_w = 1.0 / (jnp.reshape(weights, (1, f_total)).astype(jnp.float32) + eps)
    inv_w_p = jnp.pad(inv_w, ((0, 0), (0, f_pad - f_total)))    # zero pad (see kernel comment)

    kernel = make_clf_kernel(n_fillers, f_total, f_pad, tb, bsz)

    out_shapes = (
        jax.ShapeDtypeStruct((bsz, f_pad), jnp.float32),   # logits (feature-padded)
        jax.ShapeDtypeStruct((bsz, f_pad), jnp.int8),      # one-hot preds (feature-padded)
        jax.ShapeDtypeStruct((nb, 8, 128), jnp.float32),   # per-tile partial scalars
    )

    cost = pl.CostEstimate(
        flops=2 * bsz * d * f_pad,
        transcendentals=2 * bsz * f_pad,
        bytes_accessed=(bsz * d * 2 + d * f_pad * 2 + 2 * f_pad * 4
                        + bsz * f_pad * (2 + 4 + 1) + nb * 8 * 128 * 4),
    )

    resident = dict(pipeline_mode=pl.Buffered(1))          # grid-invariant: single-buffer

    logits_p, preds_p, scal = pl.pallas_call(
        kernel,
        grid=(nb,),
        in_specs=[
            pl.BlockSpec((tb, d), lambda i: (i, 0)),                  # latent tile (bf16)
            pl.BlockSpec((d, f_pad), lambda i: (0, 0), **resident),   # W (resident, 1 buffer)
            pl.BlockSpec((1, f_pad), lambda i: (0, 0), **resident),   # bias
            pl.BlockSpec((tb, f_pad), lambda i: (i, 0)),              # targets tile (bf16)
            pl.BlockSpec((1, f_pad), lambda i: (0, 0), **resident),   # 1/(weights+eps)
        ],
        out_specs=(
            pl.BlockSpec((tb, f_pad), lambda i: (i, 0)),
            pl.BlockSpec((tb, f_pad), lambda i: (i, 0)),
            pl.BlockSpec((1, 8, 128), lambda i: (i, 0, 0)),
        ),
        out_shape=out_shapes,
        cost_estimate=cost,
        compiler_params=pltpu.CompilerParams(
            dimension_semantics=("parallel",),
            vmem_limit_bytes=vmem_limit),
    )(x_p, w_p, bias_p, t_p, inv_w_p)

    logits = logits_p[:, :f_total]
    preds = preds_p[:, :f_total].astype(jnp.int32)

    # Combine per-tile partial sums (parallel-safe; no cross-grid accumulator).
    tot = jnp.sum(scal[:, 0, :], axis=0)                     # (128,)
    denom = float(bsz * f_total)
    unweighted_loss = tot[0] / denom
    weighted_loss = tot[1] / denom                           # divides by weights, as in torch ref
    acc_factors = tot[2] / tot[3]
    acc_combs = tot[4] / float(bsz)

    tgts_f32 = tgts.astype(jnp.float32)
    return {
        "loss": {
            "total_loss": weighted_loss,
            "unweighted_loss": unweighted_loss,
            "acc_factors": acc_factors,
            "acc_combs": acc_combs,
        },
        "state": {
            "latent_reps": latent_reps,
            "preds": preds,
            "logits": logits,
            "tgt": tgts_f32,
        },
    }


if __name__ == "__main__":
    # Small deterministic example consistent with BaseClf's forward:
    #   latent_reps [B, D] -> Linear(D -> F) -> logits [B, F]
    #   tgts [B, F] multi-one-hot (one-hot per role/factor, concatenated)
    # B=48 exercises 2 grid tiles of 32 incl. one partial tail block.
    B, D = 48, 32
    n_fillers_per_role = (3, 4, 5)
    F = int(sum(n_fillers_per_role))

    key = jax.random.PRNGKey(0)
    k_x, k_w, k_t = jax.random.split(key, 3)

    latent_reps = jax.random.normal(k_x, (B, D), dtype=jnp.float32)
    W = 0.1 * jax.random.normal(k_w, (D, F), dtype=jnp.float32)
    bias = jnp.zeros((1, F), dtype=jnp.float32)

    tgt_parts = []
    for i, n in enumerate(n_fillers_per_role):
        idx = jax.random.randint(jax.random.fold_in(k_t, i), (B,), 0, n)
        tgt_parts.append(jax.nn.one_hot(idx, n, dtype=jnp.float32))
    tgts = jnp.concatenate(tgt_parts, axis=1)

    filler_weights = jnp.ones((1, F), dtype=jnp.float32)
    role_weights = jnp.ones((1, len(n_fillers_per_role)), dtype=jnp.float32)
    expanded_role_weights = jnp.repeat(
        role_weights, repeats=np.asarray(n_fillers_per_role), axis=1)
    weights = filler_weights * expanded_role_weights

    out = base_clf_forward(latent_reps, tgts, W, bias, weights,
                           n_fillers_per_role=n_fillers_per_role, eps=1e-4)
    jax.block_until_ready(out)

    # --- pure-JAX reference (same bf16-cast matmul operands) sanity check ---
    xr = latent_reps.astype(jnp.bfloat16).astype(jnp.float32)
    wr = W.astype(jnp.bfloat16).astype(jnp.float32)
    ref_logits = xr @ wr + bias
    ref_bce = (jnp.maximum(ref_logits, 0.0) - ref_logits * tgts
               + jnp.log1p(jnp.exp(-jnp.abs(ref_logits))))
    ref_loss = jnp.mean(ref_bce)
    ref_wloss = jnp.mean(ref_bce / (weights + 1e-4))
    parts, off = [], 0
    for n in n_fillers_per_role:
        seg = ref_logits[:, off:off + n]
        parts.append(jax.nn.one_hot(jnp.argmax(seg, axis=1), n, dtype=jnp.int32))
        off += n
    ref_preds = jnp.concatenate(parts, axis=1)
    ref_mask = (ref_preds == (tgts > 0.5).astype(jnp.int32)).astype(jnp.int32)
    ref_accf = jnp.sum((ref_preds * ref_mask).astype(jnp.float32)) / jnp.sum(tgts)
    ref_accc = jnp.mean((jnp.sum(ref_mask, axis=1) == F).astype(jnp.float32))

    np.testing.assert_allclose(np.asarray(out["state"]["logits"]),
                               np.asarray(ref_logits), rtol=1e-3, atol=1e-3)
    assert np.array_equal(np.asarray(out["state"]["preds"]), np.asarray(ref_preds))
    np.testing.assert_allclose(float(out["loss"]["unweighted_loss"]),
                               float(ref_loss), rtol=1e-3, atol=1e-3)
    np.testing.assert_allclose(float(out["loss"]["total_loss"]),
                               float(ref_wloss), rtol=1e-3, atol=1e-3)
    np.testing.assert_allclose(float(out["loss"]["acc_factors"]),
                               float(ref_accf), rtol=1e-3, atol=1e-3)
    np.testing.assert_allclose(float(out["loss"]["acc_combs"]),
                               float(ref_accc), rtol=1e-3, atol=1e-3)

    print("KERNEL_OK")
</pallas_src>

<mosaic_0001>
module attributes {stable_mosaic.version = 11 : i64} {
  func.func @kernel(%arg0: i32, %arg1: memref<32x32xbf16, #tpu.memory_space<vmem>>, %arg2: memref<32x128xbf16, #tpu.memory_space<vmem>>, %arg3: memref<1x128xf32, #tpu.memory_space<vmem>>, %arg4: memref<32x128xbf16, #tpu.memory_space<vmem>>, %arg5: memref<1x128xf32, #tpu.memory_space<vmem>>, %arg6: memref<32x128xf32, #tpu.memory_space<vmem>>, %arg7: memref<32x128xi8, #tpu.memory_space<vmem>>, %arg8: memref<1x8x128xf32, #tpu.memory_space<vmem>>) attributes {dimension_semantics = [#tpu.dimension_semantics<parallel>], iteration_bounds = array<i64: 2>, scalar_prefetch = 0 : i64, scratch_operands = 0 : i64, tpu.core_type = #tpu.core_type<tc>, window_params = [{transform_indices = @transform_0, window_bounds = array<i64: 32, 32>}, {pipeline_mode = #tpu.pipeline_mode<synchronous>, transform_indices = @transform_1, window_bounds = array<i64: 32, 128>}, {pipeline_mode = #tpu.pipeline_mode<synchronous>, transform_indices = @transform_2, window_bounds = array<i64: 1, 128>}, {transform_indices = @transform_3, window_bounds = array<i64: 32, 128>}, {pipeline_mode = #tpu.pipeline_mode<synchronous>, transform_indices = @transform_4, window_bounds = array<i64: 1, 128>}, {transform_indices = @transform_5, window_bounds = array<i64: 32, 128>}, {transform_indices = @transform_6, window_bounds = array<i64: 32, 128>}, {transform_indices = @transform_7, window_bounds = array<i64: 1, 8, 128>}]} {
    %c0 = arith.constant 0 : index
    %c0_0 = arith.constant 0 : index
    %0 = vector.load %arg1[%c0, %c0_0] : memref<32x32xbf16, #tpu.memory_space<vmem>>, vector<32x32xbf16>
    %c0_1 = arith.constant 0 : index
    %c0_2 = arith.constant 0 : index
    %1 = vector.load %arg2[%c0_1, %c0_2] : memref<32x128xbf16, #tpu.memory_space<vmem>>, vector<32x128xbf16>
    %cst = arith.constant dense<0.000000e+00> : vector<32x128xf32>
    %2 = tpu.matmul %0, %1, %cst {dimension_numbers = #tpu.dot_dimension_numbers<[1], [0], [0], [1], [0, 0, 1, 1], [], []>} : vector<32x32xbf16>, vector<32x128xbf16>, vector<32x128xf32> -> vector<32x128xf32>
    %c0_3 = arith.constant 0 : index
    %c0_4 = arith.constant 0 : index
    %3 = vector.load %arg3[%c0_3, %c0_4] : memref<1x128xf32, #tpu.memory_space<vmem>>, vector<1x128xf32>
    %4 = vector.broadcast %3 : vector<1x128xf32> to vector<32x128xf32>
    %5 = arith.addf %2, %4 : vector<32x128xf32>
    %c0_5 = arith.constant 0 : index
    %c0_6 = arith.constant 0 : index
    %6 = vector.load %arg6[%c0_5, %c0_6] : memref<32x128xf32, #tpu.memory_space<vmem>>, vector<32x128xf32>
    tpu.vector_store %arg6[%c0_5, %c0_6], %5 {strides = array<i32>} : memref<32x128xf32, #tpu.memory_space<vmem>>, vector<32x128xf32>,
    %7 = tpu.iota {dimensions = array<i32: 1>} : vector<32x128xi32>
    %8 = tpu.iota {dimensions = array<i32: 0>} : vector<32x128xi32>
    %c32_i32 = arith.constant 32 : i32
    %9 = arith.muli %arg0, %c32_i32 : i32
    %10 = vector.broadcast %9 : i32 to vector<32x128xi32>
    %11 = arith.addi %8, %10 : vector<32x128xi32>
    %c12_i32 = arith.constant 12 : i32
    %12 = vector.broadcast %c12_i32 : i32 to vector<32x128xi32>
    %13 = arith.cmpi slt, %7, %12 : vector<32x128xi32>
    %c48_i32 = arith.constant 48 : i32
    %14 = vector.broadcast %c48_i32 : i32 to vector<32x128xi32>
    %15 = arith.cmpi slt, %11, %14 : vector<32x128xi32>
    %16 = arith.andi %13, %15 : vector<32x128xi1>
    %c0_7 = arith.constant 0 : index
    %c0_8 = arith.constant 0 : index
    %17 = vector.load %arg4[%c0_7, %c0_8] : memref<32x128xbf16, #tpu.memory_space<vmem>>, vector<32x128xbf16>
    %18 = arith.extf %17 : vector<32x128xbf16> to vector<32x128xf32>
    %cst_9 = arith.constant 0.000000e+00 : f32
    %19 = vector.broadcast %cst_9 : f32 to vector<32x128xf32>
    %20 = arith.select %16, %18, %19 : vector<32x128xi1>, vector<32x128xf32>
    %cst_10 = arith.constant 0.000000e+00 : f32
    %21 = vector.broadcast %cst_10 : f32 to vector<32x128xf32>
    %22 = arith.maximumf %5, %21 : vector<32x128xf32>
    %23 = arith.mulf %5, %20 : vector<32x128xf32>
    %24 = arith.subf %22, %23 : vector<32x128xf32>
    %25 = math.absf %5 : vector<32x128xf32>
    %cst_11 = arith.constant 0.000000e+00 : f32
    %26 = vector.broadcast %cst_11 : f32 to vector<32x128xf32>
    %27 = arith.subf %26, %25 : vector<32x128xf32>
    %28 = math.exp %27 : vector<32x128xf32>
    %29 = math.log1p %28 : vector<32x128xf32>
    %30 = arith.addf %24, %29 : vector<32x128xf32>
    %cst_12 = arith.constant 0.000000e+00 : f32
    %31 = vector.broadcast %cst_12 : f32 to vector<32x128xf32>
    %32 = arith.select %16, %30, %31 : vector<32x128xi1>, vector<32x128xf32>
    %33 = vector.shape_cast %32 : vector<32x128xf32> to vector<1x32x128xf32>
    %cst_13 = arith.constant dense<0.000000e+00> : vector<1xf32>
    %34 = vector.multi_reduction <add>, %33, %cst_13 [1, 2] : vector<1x32x128xf32> to vector<1xf32>
    %35 = vector.shape_cast %34 : vector<1xf32> to vector<1x1x1xf32>
    %36 = vector.extract %35[0, 0, 0] : f32 from vector<1x1x1xf32>
    %37 = vector.broadcast %36 : f32 to vector<1x1xf32>
    %c0_14 = arith.constant 0 : index
    %c0_15 = arith.constant 0 : index
    %38 = vector.load %arg5[%c0_14, %c0_15] : memref<1x128xf32, #tpu.memory_space<vmem>>, vector<1x128xf32>
    %39 = vector.broadcast %38 : vector<1x128xf32> to vector<32x128xf32>
    %40 = arith.mulf %32, %39 : vector<32x128xf32>
    %41 = vector.shape_cast %40 : vector<32x128xf32> to vector<1x32x128xf32>
    %cst_16 = arith.constant dense<0.000000e+00> : vector<1xf32>
    %42 = vector.multi_reduction <add>, %41, %cst_16 [1, 2] : vector<1x32x128xf32> to vector<1xf32>
    %43 = vector.shape_cast %42 : vector<1xf32> to vector<1x1x1xf32>
    %44 = vector.extract %43[0, 0, 0] : f32 from vector<1x1x1xf32>
    %45 = vector.broadcast %44 : f32 to vector<1x1xf32>
    %46 = tpu.iota {dimensions = array<i32: 2>} : vector<3x1x128xi32>
    %47 = tpu.iota {dimensions = array<i32: 0>} : vector<3x1x128xi32>
    %c0_i32 = arith.constant 0 : i32
    %48 = vector.broadcast %c0_i32 : i32 to vector<3x1x128xi32>
    %49 = arith.cmpi eq, %47, %48 : vector<3x1x128xi32>
    %c0_i32_17 = arith.constant 0 : i32
    %c0_i32_18 = arith.constant 0 : i32
    %50 = vector.broadcast %c0_i32_17 : i32 to vector<3x1x128xi32>
    %51 = vector.broadcast %c0_i32_18 : i32 to vector<3x1x128xi32>
    %52 = arith.select %49, %50, %51 : vector<3x1x128xi1>, vector<3x1x128xi32>
    %c0_i32_19 = arith.constant 0 : i32
    %53 = vector.broadcast %c0_i32_19 : i32 to vector<3x1x128xi32>
    %54 = arith.cmpi eq, %47, %53 : vector<3x1x128xi32>
    %c3_i32 = arith.constant 3 : i32
    %c0_i32_20 = arith.constant 0 : i32
    %55 = vector.broadcast %c3_i32 : i32 to vector<3x1x128xi32>
    %56 = vector.broadcast %c0_i32_20 : i32 to vector<3x1x128xi32>
    %57 = arith.select %54, %55, %56 : vector<3x1x128xi1>, vector<3x1x128xi32>
    %c1_i32 = arith.constant 1 : i32
    %58 = vector.broadcast %c1_i32 : i32 to vector<3x1x128xi32>
    %59 = arith.cmpi eq, %47, %58 : vector<3x1x128xi32>
    %c3_i32_21 = arith.constant 3 : i32
    %60 = vector.broadcast %c3_i32_21 : i32 to vector<3x1x128xi32>
    %61 = arith.select %59, %60, %52 : vector<3x1x128xi1>, vector<3x1x128xi32>
    %c1_i32_22 = arith.constant 1 : i32
    %62 = vector.broadcast %c1_i32_22 : i32 to vector<3x1x128xi32>
    %63 = arith.cmpi eq, %47, %62 : vector<3x1x128xi32>
    %c7_i32 = arith.constant 7 : i32
    %64 = vector.broadcast %c7_i32 : i32 to vector<3x1x128xi32>
    %65 = arith.select %63, %64, %57 : vector<3x1x128xi1>, vector<3x1x128xi32>
    %c2_i32 = arith.constant 2 : i32
    %66 = vector.broadcast %c2_i32 : i32 to vector<3x1x128xi32>
    %67 = arith.cmpi eq, %47, %66 : vector<3x1x128xi32>
    %c7_i32_23 = arith.constant 7 : i32
    %68 = vector.broadcast %c7_i32_23 : i32 to vector<3x1x128xi32>
    %69 = arith.select %67, %68, %61 : vector<3x1x128xi1>, vector<3x1x128xi32>
    %c2_i32_24 = arith.constant 2 : i32
    %70 = vector.broadcast %c2_i32_24 : i32 to vector<3x1x128xi32>
    %71 = arith.cmpi eq, %47, %70 : vector<3x1x128xi32>
    %c12_i32_25 = arith.constant 12 : i32
    %72 = vector.broadcast %c12_i32_25 : i32 to vector<3x1x128xi32>
    %73 = arith.select %71, %72, %65 : vector<3x1x128xi1>, vector<3x1x128xi32>
    %74 = arith.cmpi sge, %46, %69 : vector<3x1x128xi32>
    %75 = arith.cmpi slt, %46, %73 : vector<3x1x128xi32>
    %76 = arith.andi %74, %75 : vector<3x1x128xi1>
    %77 = vector.shape_cast %5 : vector<32x128xf32> to vector<1x32x128xf32>
    %cst_26 = arith.constant 0xFF800000 : f32
    %78 = vector.shape_cast %76 : vector<3x1x128xi1> to vector<3x1x128xi1>
    %79 = vector.broadcast %78 : vector<3x1x128xi1> to vector<3x32x128xi1>
    %80 = vector.shape_cast %77 : vector<1x32x128xf32> to vector<1x32x128xf32>
    %81 = vector.broadcast %80 : vector<1x32x128xf32> to vector<3x32x128xf32>
    %82 = vector.broadcast %cst_26 : f32 to vector<3x32x128xf32>
    %83 = arith.select %79, %81, %82 : vector<3x32x128xi1>, vector<3x32x128xf32>
    %cst_27 = arith.constant dense<0xFF800000> : vector<3x32xf32>
    %84 = vector.multi_reduction <maximumf>, %83, %cst_27 [2] : vector<3x32x128xf32> to vector<3x32xf32>
    %85 = vector.shape_cast %84 : vector<3x32xf32> to vector<3x32x1xf32>
    %86 = vector.broadcast %85 : vector<3x32x1xf32> to vector<3x32x128xf32>
    %87 = arith.cmpf oeq, %83, %86 : vector<3x32x128xf32>
    %88 = vector.broadcast %76 : vector<3x1x128xi1> to vector<3x32x128xi1>
    %89 = arith.andi %87, %88 : vector<3x32x128xi1>
    %c128_i32 = arith.constant 128 : i32
    %90 = vector.shape_cast %46 : vector<3x1x128xi32> to vector<3x1x128xi32>
    %91 = vector.broadcast %90 : vector<3x1x128xi32> to vector<3x32x128xi32>
    %92 = vector.broadcast %c128_i32 : i32 to vector<3x32x128xi32>
    %93 = arith.select %89, %91, %92 : vector<3x32x128xi1>, vector<3x32x128xi32>
    %cst_28 = arith.constant dense<2147483647> : vector<3x32xi32>
    %94 = vector.multi_reduction <minsi>, %93, %cst_28 [2] : vector<3x32x128xi32> to vector<3x32xi32>
    %95 = vector.shape_cast %94 : vector<3x32xi32> to vector<3x32x1xi32>
    %96 = vector.broadcast %46 : vector<3x1x128xi32> to vector<3x32x128xi32>
    %97 = vector.broadcast %95 : vector<3x32x1xi32> to vector<3x32x128xi32>
    %98 = arith.cmpi eq, %96, %97 : vector<3x32x128xi32>
    %99 = arith.extui %98 : vector<3x32x128xi1> to vector<3x32x128xi32>
    %cst_29 = arith.constant dense<0> : vector<32x128xi32>
    %100 = vector.multi_reduction <add>, %99, %cst_29 [0] : vector<3x32x128xi32> to vector<32x128xi32>
    %101 = arith.trunci %100 : vector<32x128xi32> to vector<32x128xi8>
    %c0_30 = arith.constant 0 : index
    %c0_31 = arith.constant 0 : index
    %102 = vector.load %arg7[%c0_30, %c0_31] : memref<32x128xi8, #tpu.memory_space<vmem>>, vector<32x128xi8>
    tpu.vector_store %arg7[%c0_30, %c0_31], %101 {strides = array<i32>} : memref<32x128xi8, #tpu.memory_space<vmem>>, vector<32x128xi8>,
    %cst_32 = arith.constant 5.000000e-01 : f32
    %103 = vector.broadcast %cst_32 : f32 to vector<32x128xf32>
    %104 = arith.cmpf ogt, %20, %103 : vector<32x128xf32>
    %105 = arith.extui %104 : vector<32x128xi1> to vector<32x128xi32>
    %c1_i32_33 = arith.constant 1 : i32
    %106 = vector.broadcast %c1_i32_33 : i32 to vector<32x128xi32>
    %107 = arith.cmpi eq, %100, %106 : vector<32x128xi32>
    %c1_i32_34 = arith.constant 1 : i32
    %108 = vector.broadcast %c1_i32_34 : i32 to vector<32x128xi32>
    %109 = arith.cmpi eq, %105, %108 : vector<32x128xi32>
    %110 = arith.andi %107, %109 : vector<32x128xi1>
    %111 = arith.extui %110 : vector<32x128xi1> to vector<32x128xi32>
    %112 = arith.sitofp %111 : vector<32x128xi32> to vector<32x128xf32>
    %113 = vector.shape_cast %112 : vector<32x128xf32> to vector<1x32x128xf32>
    %cst_35 = arith.constant dense<0.000000e+00> : vector<1xf32>
    %114 = vector.multi_reduction <add>, %113, %cst_35 [1, 2] : vector<1x32x128xf32> to vector<1xf32>
    %115 = vector.shape_cast %114 : vector<1xf32> to vector<1x1x1xf32>
    %116 = vector.extract %115[0, 0, 0] : f32 from vector<1x1x1xf32>
    %117 = vector.broadcast %116 : f32 to vector<1x1xf32>
    %118 = vector.shape_cast %20 : vector<32x128xf32> to vector<1x32x128xf32>
    %cst_36 = arith.constant dense<0.000000e+00> : vector<1xf32>
    %119 = vector.multi_reduction <add>, %118, %cst_36 [1, 2] : vector<1x32x128xf32> to vector<1xf32>
    %120 = vector.shape_cast %119 : vector<1xf32> to vector<1x1x1xf32>
    %121 = vector.extract %120[0, 0, 0] : f32 from vector<1x1x1xf32>
    %122 = vector.broadcast %121 : f32 to vector<1x1xf32>
    %123 = arith.cmpi ne, %100, %105 : vector<32x128xi32>
    %cst_37 = arith.constant dense<true> : vector<32x128xi1>
    %124 = arith.xori %15, %cst_37 : vector<32x128xi1>
    %125 = arith.ori %123, %124 : vector<32x128xi1>
    %126 = arith.extui %125 : vector<32x128xi1> to vector<32x128xi32>
    %cst_38 = arith.constant dense<0> : vector<32xi32>
    %127 = vector.multi_reduction <add>, %126, %cst_38 [1] : vector<32x128xi32> to vector<32xi32>
    %128 = vector.shape_cast %127 : vector<32xi32> to vector<32x1xi32>
    %c0_i32_39 = arith.constant 0 : i32
    %129 = vector.broadcast %c0_i32_39 : i32 to vector<32x1xi32>
    %130 = arith.cmpi eq, %128, %129 : vector<32x1xi32>
    %131 = arith.extui %130 : vector<32x1xi1> to vector<32x1xi32>
    %132 = arith.sitofp %131 : vector<32x1xi32> to vector<32x1xf32>
    %133 = vector.shape_cast %132 : vector<32x1xf32> to vector<1x32x1xf32>
    %cst_40 = arith.constant dense<0.000000e+00> : vector<1xf32>
    %134 = vector.multi_reduction <add>, %133, %cst_40 [1, 2] : vector<1x32x1xf32> to vector<1xf32>
    %135 = vector.shape_cast %134 : vector<1xf32> to vector<1x1x1xf32>
    %136 = vector.extract %135[0, 0, 0] : f32 from vector<1x1x1xf32>
    %137 = vector.broadcast %136 : f32 to vector<1x1xf32>
    %138 = tpu.iota {dimensions = array<i32: 1>} : vector<8x128xi32>
    %139 = tpu.iota {dimensions = array<i32: 0>} : vector<8x128xi32>
    %c0_i32_41 = arith.constant 0 : i32
    %140 = vector.broadcast %c0_i32_41 : i32 to vector<8x128xi32>
    %141 = arith.cmpi eq, %139, %140 : vector<8x128xi32>
    %c0_i32_42 = arith.constant 0 : i32
    %142 = vector.broadcast %c0_i32_42 : i32 to vector<8x128xi32>
    %143 = arith.cmpi eq, %138, %142 : vector<8x128xi32>
    %144 = arith.andi %141, %143 : vector<8x128xi1>
    %cst_43 = arith.constant 0.000000e+00 : f32
    %145 = vector.shape_cast %37 : vector<1x1xf32> to vector<1x1xf32>
    %146 = vector.broadcast %145 : vector<1x1xf32> to vector<8x128xf32>
    %147 = vector.broadcast %cst_43 : f32 to vector<8x128xf32>
    %148 = arith.select %144, %146, %147 : vector<8x128xi1>, vector<8x128xf32>
    %c1_i32_44 = arith.constant 1 : i32
    %149 = vector.broadcast %c1_i32_44 : i32 to vector<8x128xi32>
    %150 = arith.cmpi eq, %138, %149 : vector<8x128xi32>
    %151 = arith.andi %141, %150 : vector<8x128xi1>
    %cst_45 = arith.constant 0.000000e+00 : f32
    %152 = vector.shape_cast %45 : vector<1x1xf32> to vector<1x1xf32>
    %153 = vector.broadcast %152 : vector<1x1xf32> to vector<8x128xf32>
    %154 = vector.broadcast %cst_45 : f32 to vector<8x128xf32>
    %155 = arith.select %151, %153, %154 : vector<8x128xi1>, vector<8x128xf32>
    %156 = arith.addf %148, %155 : vector<8x128xf32>
    %c2_i32_46 = arith.constant 2 : i32
    %157 = vector.broadcast %c2_i32_46 : i32 to vector<8x128xi32>
    %158 = arith.cmpi eq, %138, %157 : vector<8x128xi32>
    %159 = arith.andi %141, %158 : vector<8x128xi1>
    %cst_47 = arith.constant 0.000000e+00 : f32
    %160 = vector.shape_cast %117 : vector<1x1xf32> to vector<1x1xf32>
    %161 = vector.broadcast %160 : vector<1x1xf32> to vector<8x128xf32>
    %162 = vector.broadcast %cst_47 : f32 to vector<8x128xf32>
    %163 = arith.select %159, %161, %162 : vector<8x128xi1>, vector<8x128xf32>
    %164 = arith.addf %156, %163 : vector<8x128xf32>
    %c3_i32_48 = arith.constant 3 : i32
    %165 = vector.broadcast %c3_i32_48 : i32 to vector<8x128xi32>
    %166 = arith.cmpi eq, %138, %165 : vector<8x128xi32>
    %167 = arith.andi %141, %166 : vector<8x128xi1>
    %cst_49 = arith.constant 0.000000e+00 : f32
    %168 = vector.shape_cast %122 : vector<1x1xf32> to vector<1x1xf32>
    %169 = vector.broadcast %168 : vector<1x1xf32> to vector<8x128xf32>
    %170 = vector.broadcast %cst_49 : f32 to vector<8x128xf32>
    %171 = arith.select %167, %169, %170 : vector<8x128xi1>, vector<8x128xf32>
    %172 = arith.addf %164, %171 : vector<8x128xf32>
    %c4_i32 = arith.constant 4 : i32
    %173 = vector.broadcast %c4_i32 : i32 to vector<8x128xi32>
    %174 = arith.cmpi eq, %138, %173 : vector<8x128xi32>
    %175 = arith.andi %141, %174 : vector<8x128xi1>
    %cst_50 = arith.constant 0.000000e+00 : f32
    %176 = vector.shape_cast %137 : vector<1x1xf32> to vector<1x1xf32>
    %177 = vector.broadcast %176 : vector<1x1xf32> to vector<8x128xf32>
    %178 = vector.broadcast %cst_50 : f32 to vector<8x128xf32>
    %179 = arith.select %175, %177, %178 : vector<8x128xi1>, vector<8x128xf32>
    %180 = arith.addf %172, %179 : vector<8x128xf32>
    %181 = vector.shape_cast %180 : vector<8x128xf32> to vector<1x8x128xf32>
    %c0_51 = arith.constant 0 : index
    %c0_52 = arith.constant 0 : index
    %c0_53 = arith.constant 0 : index
    %182 = vector.load %arg8[%c0_51, %c0_52, %c0_53] : memref<1x8x128xf32, #tpu.memory_space<vmem>>, vector<1x8x128xf32>
    tpu.vector_store %arg8[%c0_51, %c0_52, %c0_53], %181 {strides = array<i32>} : memref<1x8x128xf32, #tpu.memory_space<vmem>>, vector<1x8x128xf32>,
    return
  }
  func.func @transform_0(%arg0: i32) -> (i32, i32) {
    %c0_i32 = arith.constant 0 : i32
    %c0_i32_0 = arith.constant 0 : i32
    return %arg0, %c0_i32 : i32, i32
  }
  func.func @transform_1(%arg0: i32) -> (i32, i32) {
    %c0_i32 = arith.constant 0 : i32
    %c0_i32_0 = arith.constant 0 : i32
    %c0_i32_1 = arith.constant 0 : i32
    return %c0_i32, %c0_i32_0 : i32, i32
  }
  func.func @transform_2(%arg0: i32) -> (i32, i32) {
    %c0_i32 = arith.constant 0 : i32
    %c0_i32_0 = arith.constant 0 : i32
    %c0_i32_1 = arith.constant 0 : i32
    return %c0_i32, %c0_i32_0 : i32, i32
  }
  func.func @transform_3(%arg0: i32) -> (i32, i32) {
    %c0_i32 = arith.constant 0 : i32
    %c0_i32_0 = arith.constant 0 : i32
    return %arg0, %c0_i32 : i32, i32
  }
  func.func @transform_4(%arg0: i32) -> (i32, i32) {
    %c0_i32 = arith.constant 0 : i32
    %c0_i32_0 = arith.constant 0 : i32
    %c0_i32_1 = arith.constant 0 : i32
    return %c0_i32, %c0_i32_0 : i32, i32
  }
  func.func @transform_5(%arg0: i32) -> (i32, i32) {
    %c0_i32 = arith.constant 0 : i32
    %c0_i32_0 = arith.constant 0 : i32
    return %arg0, %c0_i32 : i32, i32
  }
  func.func @transform_6(%arg0: i32) -> (i32, i32) {
    %c0_i32 = arith.constant 0 : i32
    %c0_i32_0 = arith.constant 0 : i32
    return %arg0, %c0_i32 : i32, i32
  }
  func.func @transform_7(%arg0: i32) -> (i32, i32, i32) {
    %c0_i32 = arith.constant 0 : i32
    %c0_i32_0 = arith.constant 0 : i32
    %c0_i32_1 = arith.constant 0 : i32
    return %arg0, %c0_i32, %c0_i32_0 : i32, i32, i32
  }
}

</mosaic_0001>

<llo_original>
// kernel: base_clf_forward.1
$region0: #{base_clf_forward.1}
  #allocation0 [shape = 'u32[]', space=smem, size = 0x4, offset = 0x4, fixed_abs, tag = 'smem constant byte address 0x4 - core index']
  #allocation1 [shape = 'u32[144,128]{1,0:T(1,128)}', space=vmem, size = 0x12000, scoped, tag = 'internal scratch']
  %s0 = inlined_call_operand.vmem [shape: bf16[48,32], index: 0, kind: input, shape index: {}]
  %s1 = inlined_call_operand.vmem [shape: bf16[32,128], index: 1, kind: input, shape index: {}]
  %s2 = inlined_call_operand.vmem [shape: f32[1,128], index: 2, kind: input, shape index: {}]
  %s3 = inlined_call_operand.vmem [shape: bf16[48,128], index: 3, kind: input, shape index: {}]
  %s4 = inlined_call_operand.vmem [shape: f32[1,128], index: 4, kind: input, shape index: {}]
  %s5 = inlined_call_operand.vmem [shape: f32[48,128], index: 5, kind: output, shape index: {0}]
  %s6 = inlined_call_operand.vmem [shape: s8[48,128], index: 6, kind: output, shape index: {1}]
  %s7 = inlined_call_operand.vmem [shape: f32[2,8,128], index: 7, kind: output, shape index: {2}]
  %8 = xla_tuple %s5, %s6, %s7
  %s9 = sld [smem:[#allocation0]]
  $region161: #{base_clf_forward.1} parent=0
    _
  %s11 = ssub.s32 1, %s9
  %s12 = scalar_select 0, %s11, %s9
  $region1: #{base_clf_forward.1} parent=0
    #allocation2 [shape = 'u8[32768]{0}', space=vmem, size = 0x8000, scoped, tag = 'output window, operand 0']
    #allocation3 [shape = 'u8[8192]{0}', space=vmem, size = 0x2000, scoped, tag = 'output window, operand 1']
    loop: start=0, step=1, limit=4
    $region2: #{base_clf_forward.1} parent=1 // loop_pre_header
      _
    $region3: #{base_clf_forward.1} parent=1 // loop_header
      %s14 = sphi 0, %s18
      %p15 = scmp.ge.s32.totalorder %s14, 4
      %s24 = sphi 0, %s26
      %s27 = sphi 0, %s24
      %s28 = sphi 0, %s27
      %s44 = sphi 0, %s28
      %s48 = sphi 0, %s48
      %s50 = sphi 0, %s48
      %s51 = sphi 0, %s50
      %s65 = sphi 0, %s51
      %s69 = sphi 0, %s69
      %s71 = sphi 0, %s69
      %s72 = sphi 0, %s71
      %s86 = sphi 0, %s72
      %s92 = sphi 0, %s94
      %s95 = sphi 0, %s92
      %s96 = sphi 0, %s95
      %s112 = sphi 0, %s96
      %s116 = sphi 0, %s116
      %s118 = sphi 0, %s116
      %s119 = sphi 0, %s118
      %s133 = sphi 0, %s119
      %s139 = sphi 0, %s141
      %s142 = sphi 0, %s139
      %s143 = sphi 0, %s142
      %s159 = sphi 0, %s143
      %s165 = sphi 0, %s167
      %s168 = sphi 0, %s165
      %s169 = sphi 0, %s168
      %s185 = sphi 0, %s169
      %s191 = sphi 0, %s193
      %s194 = sphi 0, %s191
      %s195 = sphi 0, %s194
      %s211 = sphi 0, %s195
    $region4: #{base_clf_forward.1} parent=1 // loop_header_branch
      %17 = sbr.rel (%p15) target = $region8
    $region5: #{base_clf_forward.1} parent=1 // loop_body
      %s19 = ssub.s32 %s14, 1
      %s20 = ssub.s32 %s14, 2
      %s21 = sadd.s32 %s14, 1
      %s22 = ssub.s32 %s14, %s21
      %p23 = scmp.eq.s32.totalorder %s22, 0
      %s25 = sadd.s32 %s24, 1
      %s26 = scalar_select %p23, %s24, %s25
      %p29 = pneg %p23
      %p30 = scmp.eq.s32.totalorder %s14, 1
      %p31 = por %p29, %p30
      %p32 = scmp.ne.s32.totalorder %s24, %s27
      %p33 = scmp.eq.s32.totalorder %s14, 0
      %p34 = por %p32, %p33
      %p35 = scmp.ne.s32.totalorder %s24, %s27
      %p36 = scmp.eq.s32.totalorder %s19, 1
      %p37 = por %p35, %p36
      %p38 = scmp.ne.s32.totalorder %s27, %s28
      %p39 = scmp.eq.s32.totalorder %s19, 0
      %p40 = por %p38, %p39
      %p41 = scmp.ne.s32.totalorder %s27, %s28
      %p42 = scmp.eq.s32.totalorder %s20, 1
      %p43 = por %p41, %p42
      %p45 = scmp.ne.s32.totalorder %s28, %s44
      %p46 = scmp.eq.s32.totalorder %s20, 0
      %p47 = por %p45, %p46
      %s49 = sadd.s32 %s48, 1
      %p52 = scmp.eq.s32.totalorder %s14, 1
      %p53 = scmp.ne.s32.totalorder %s48, %s50
      %p54 = scmp.eq.s32.totalorder %s14, 0
      %p55 = por %p53, %p54
      %p56 = scmp.ne.s32.totalorder %s48, %s50
      %p57 = scmp.eq.s32.totalorder %s19, 1
      %p58 = por %p56, %p57
      %p59 = scmp.ne.s32.totalorder %s50, %s51
      %p60 = scmp.eq.s32.totalorder %s19, 0
      %p61 = por %p59, %p60
      %p62 = scmp.ne.s32.totalorder %s50, %s51
      %p63 = scmp.eq.s32.totalorder %s20, 1
      %p64 = por %p62, %p63
      %p66 = scmp.ne.s32.totalorder %s51, %s65
      %p67 = scmp.eq.s32.totalorder %s20, 0
      %p68 = por %p66, %p67
      %s70 = sadd.s32 %s69, 1
      %p73 = scmp.eq.s32.totalorder %s14, 1
      %p74 = scmp.ne.s32.totalorder %s69, %s71
      %p75 = scmp.eq.s32.totalorder %s14, 0
      %p76 = por %p74, %p75
      %p77 = scmp.ne.s32.totalorder %s69, %s71
      %p78 = scmp.eq.s32.totalorder %s19, 1
      %p79 = por %p77, %p78
      %p80 = scmp.ne.s32.totalorder %s71, %s72
      %p81 = scmp.eq.s32.totalorder %s19, 0
      %p82 = por %p80, %p81
      %p83 = scmp.ne.s32.totalorder %s71, %s72
      %p84 = scmp.eq.s32.totalorder %s20, 1
      %p85 = por %p83, %p84
      %p87 = scmp.ne.s32.totalorder %s72, %s86
      %p88 = scmp.eq.s32.totalorder %s20, 0
      %p89 = por %p87, %p88
      %s90 = ssub.s32 %s14, %s21
      %p91 = scmp.eq.s32.totalorder %s90, 0
      %s93 = sadd.s32 %s92, 1
      %s94 = scalar_select %p91, %s92, %s93
      %p97 = pneg %p91
      %p98 = scmp.eq.s32.totalorder %s14, 1
      %p99 = por %p97, %p98
      %p100 = scmp.ne.s32.totalorder %s92, %s95
      %p101 = scmp.eq.s32.totalorder %s14, 0
      %p102 = por %p100, %p101
      %p103 = scmp.ne.s32.totalorder %s92, %s95
      %p104 = scmp.eq.s32.totalorder %s19, 1
      %p105 = por %p103, %p104
      %p106 = scmp.ne.s32.totalorder %s95, %s96
      %p107 = scmp.eq.s32.totalorder %s19, 0
      %p108 = por %p106, %p107
      %p109 = scmp.ne.s32.totalorder %s95, %s96
      %p110 = scmp.eq.s32.totalorder %s20, 1
      %p111 = por %p109, %p110
      %p113 = scmp.ne.s32.totalorder %s96, %s112
      %p114 = scmp.eq.s32.totalorder %s20, 0
      %p115 = por %p113, %p114
      %s117 = sadd.s32 %s116, 1
      %p120 = scmp.eq.s32.totalorder %s14, 1
      %p121 = scmp.ne.s32.totalorder %s116, %s118
      %p122 = scmp.eq.s32.totalorder %s14, 0
      %p123 = por %p121, %p122
      %p124 = scmp.ne.s32.totalorder %s116, %s118
      %p125 = scmp.eq.s32.totalorder %s19, 1
      %p126 = por %p124, %p125
      %p127 = scmp.ne.s32.totalorder %s118, %s119
      %p128 = scmp.eq.s32.totalorder %s19, 0
      %p129 = por %p127, %p128
      %p130 = scmp.ne.s32.totalorder %s118, %s119
      %p131 = scmp.eq.s32.totalorder %s20, 1
      %p132 = por %p130, %p131
      %p134 = scmp.ne.s32.totalorder %s119, %s133
      %p135 = scmp.eq.s32.totalorder %s20, 0
      %p136 = por %p134, %p135
      %s137 = ssub.s32 %s14, %s21
      %p138 = scmp.eq.s32.totalorder %s137, 0
      %s140 = sadd.s32 %s139, 1
      %s141 = scalar_select %p138, %s139, %s140
      %p144 = pneg %p138
      %p145 = scmp.eq.s32.totalorder %s14, 1
      %p146 = por %p144, %p145
      %p147 = scmp.ne.s32.totalorder %s139, %s142
      %p148 = scmp.eq.s32.totalorder %s14, 0
      %p149 = por %p147, %p148
      %p150 = scmp.ne.s32.totalorder %s139, %s142
      %p151 = scmp.eq.s32.totalorder %s19, 1
      %p152 = por %p150, %p151
      %p153 = scmp.ne.s32.totalorder %s142, %s143
      %p154 = scmp.eq.s32.totalorder %s19, 0
      %p155 = por %p153, %p154
      %p156 = scmp.ne.s32.totalorder %s142, %s143
      %p157 = scmp.eq.s32.totalorder %s20, 1
      %p158 = por %p156, %p157
      %p160 = scmp.ne.s32.totalorder %s143, %s159
      %p161 = scmp.eq.s32.totalorder %s20, 0
      %p162 = por %p160, %p161
      %s163 = ssub.s32 %s14, %s21
      %p164 = scmp.eq.s32.totalorder %s163, 0
      %s166 = sadd.s32 %s165, 1
      %s167 = scalar_select %p164, %s165, %s166
      %p170 = pneg %p164
      %p171 = scmp.eq.s32.totalorder %s14, 1
      %p172 = por %p170, %p171
      %p173 = scmp.ne.s32.totalorder %s165, %s168
      %p174 = scmp.eq.s32.totalorder %s14, 0
      %p175 = por %p173, %p174
      %p176 = scmp.ne.s32.totalorder %s165, %s168
      %p177 = scmp.eq.s32.totalorder %s19, 1
      %p178 = por %p176, %p177
      %p179 = scmp.ne.s32.totalorder %s168, %s169
      %p180 = scmp.eq.s32.totalorder %s19, 0
      %p181 = por %p179, %p180
      %p182 = scmp.ne.s32.totalorder %s168, %s169
      %p183 = scmp.eq.s32.totalorder %s20, 1
      %p184 = por %p182, %p183
      %p186 = scmp.ne.s32.totalorder %s169, %s185
      %p187 = scmp.eq.s32.totalorder %s20, 0
      %p188 = por %p186, %p187
      %s189 = ssub.s32 %s14, %s21
      %p190 = scmp.eq.s32.totalorder %s189, 0
      %s192 = sadd.s32 %s191, 1
      %s193 = scalar_select %p190, %s191, %s192
      %p196 = pneg %p190
      %p197 = scmp.eq.s32.totalorder %s14, 1
      %p198 = por %p196, %p197
      %p199 = scmp.ne.s32.totalorder %s191, %s194
      %p200 = scmp.eq.s32.totalorder %s14, 0
      %p201 = por %p199, %p200
      %p202 = scmp.ne.s32.totalorder %s191, %s194
      %p203 = scmp.eq.s32.totalorder %s19, 1
      %p204 = por %p202, %p203
      %p205 = scmp.ne.s32.totalorder %s194, %s195
      %p206 = scmp.eq.s32.totalorder %s19, 0
      %p207 = por %p205, %p206
      %p208 = scmp.ne.s32.totalorder %s194, %s195
      %p209 = scmp.eq.s32.totalorder %s20, 1
      %p210 = por %p208, %p209
      %p212 = scmp.ne.s32.totalorder %s195, %s211
      %p213 = scmp.eq.s32.totalorder %s20, 0
      %p214 = por %p212, %p213
      %p215 = scmp.le.s32.totalorder 1, %s14
      %p216 = scmp.lt.s32.totalorder %s14, 3
      %p217 = pnand %p215, %p216
      %p218 = pneg %p217
      // Predicated region
      $region9: #{base_clf_forward.1} parent=5 // pred_check
        _
      $region10: #{base_clf_forward.1} parent=5 // pred_check_branch
        %220 = sbr.rel (%p217) target = $region12
      $region11: #{base_clf_forward.1} parent=5 // pred_region
        %s221 = ssub.s32 %s14, 1
        // Predicated region
        $region13: #{base_clf_forward.1} parent=11 // pred_check
          %p222 = pneg %p61
        $region14: #{base_clf_forward.1} parent=11 // pred_check_branch
          %224 = sbr.rel (%p222) target = $region16
        $region15: #{base_clf_forward.1} parent=11 // pred_region
          _
        $region16: #{base_clf_forward.1} parent=11 // pred_fallthru
          _
        // Predicated region
        $region17: #{base_clf_forward.1} parent=11 // pred_check
          %p225 = pneg %p82
        $region18: #{base_clf_forward.1} parent=11 // pred_check_branch
          %227 = sbr.rel (%p225) target = $region20
        $region19: #{base_clf_forward.1} parent=11 // pred_region
          _
        $region20: #{base_clf_forward.1} parent=11 // pred_fallthru
          _
        // Predicated region
        $region21: #{base_clf_forward.1} parent=11 // pred_check
          %p228 = pneg %p129
        $region22: #{base_clf_forward.1} parent=11 // pred_check_branch
          %230 = sbr.rel (%p228) target = $region24
        $region23: #{base_clf_forward.1} parent=11 // pred_region
          _
        $region24: #{base_clf_forward.1} parent=11 // pred_fallthru
          _
      $region12: #{base_clf_forward.1} parent=5 // pred_fallthru
        _
      %p231 = scmp.lt.s32.totalorder %s14, 2
      // Predicated region
      $region25: #{base_clf_forward.1} parent=5 // pred_check
        %p232 = pneg %p231
      $region26: #{base_clf_forward.1} parent=5 // pred_check_branch
        %234 = sbr.rel (%p232) target = $region28
      $region27: #{base_clf_forward.1} parent=5 // pred_region
        // Predicated region
        $region29: #{base_clf_forward.1} parent=27 // pred_check
          %p235 = pneg %p34
        $region30: #{base_clf_forward.1} parent=27 // pred_check_branch
          %237 = sbr.rel (%p235) target = $region32
        $region31: #{base_clf_forward.1} parent=27 // pred_region
          %s238 = smul.u32 4, %s14
          %s239 = ssub.s32 6, %s238
          %p240 = scmp.lt.s32.totalorder %s239, 4
          %s241 = scalar_select %p240, %s239, 4
          %s242 = smul.u32 64, %s241
          %p243 = scmp.lt.s32.totalorder %s238, 5
          %s244 = scalar_select %p243, %s238, 5
          %s245 = smul.addr %s244, 4
          %s246 = scalar_lea.vmem %s0, %s245
          %s247 = smul.u32 4, %s14
          %s248 = ssub.s32 6, %s247
          %p249 = scmp.lt.s32.totalorder %s248, 4
          %s250 = scalar_select %p249, %s248, 4
          %s251 = smul.u32 64, %s250
        $region32: #{base_clf_forward.1} parent=27 // pred_fallthru
          _
        // Predicated region
        $region33: #{base_clf_forward.1} parent=27 // pred_check
          %p252 = pneg %p102
        $region34: #{base_clf_forward.1} parent=27 // pred_check_branch
          %254 = sbr.rel (%p252) target = $region36
        $region35: #{base_clf_forward.1} parent=27 // pred_region
          %s255 = smul.u32 4, %s14
          %s256 = ssub.s32 6, %s255
          %p257 = scmp.lt.s32.totalorder %s256, 4
          %s258 = scalar_select %p257, %s256, 4
          %s259 = smul.u32 64, %s258
          %p260 = scmp.lt.s32.totalorder %s255, 5
          %s261 = scalar_select %p260, %s255, 5
          %s262 = smul.addr %s261, 4
          %s263 = scalar_lea.vmem %s3, %s262
          %s264 = smul.u32 4, %s14
          %s265 = ssub.s32 6, %s264
          %p266 = scmp.lt.s32.totalorder %s265, 4
          %s267 = scalar_select %p266, %s265, 4
          %s268 = smul.u32 64, %s267
        $region36: #{base_clf_forward.1} parent=27 // pred_fallthru
          _
      $region28: #{base_clf_forward.1} parent=5 // pred_fallthru
        _
      %p269 = scmp.le.s32.totalorder 1, %s14
      %p270 = scmp.lt.s32.totalorder %s14, 3
      %p271 = pnand %p269, %p270
      %p272 = pneg %p271
      // Predicated region
      $region37: #{base_clf_forward.1} parent=5 // pred_check
        _
      $region38: #{base_clf_forward.1} parent=5 // pred_check_branch
        %274 = sbr.rel (%p271) target = $region40
      $region39: #{base_clf_forward.1} parent=5 // pred_region
        %s275 = ssub.s32 %s14, 1
        %s276 = smul.u32 4, %s19
        %s277 = ssub.s32 6, %s276
        %p278 = scmp.lt.s32.totalorder %s277, 4
        %s279 = scalar_select %p278, %s277, 4
        %s280 = smul.u32 64, %s279
        %p281 = scmp.lt.s32.totalorder %s276, 5
        %s282 = scalar_select %p281, %s276, 5
        %s283 = smul.addr %s282, 4
        %s284 = scalar_lea.vmem %s0, %s283
        %p285 = pneg %p40
        %p286 = pneg %p37
        %p287 = pneg %p61
        %p288 = pneg %p58
        %p289 = pneg %p82
        %p290 = pneg %p79
        %s291 = smul.u32 4, %s19
        %s292 = ssub.s32 6, %s291
        %p293 = scmp.lt.s32.totalorder %s292, 4
        %s294 = scalar_select %p293, %s292, 4
        %s295 = smul.u32 64, %s294
        %p296 = scmp.lt.s32.totalorder %s291, 5
        %s297 = scalar_select %p296, %s291, 5
        %s298 = smul.addr %s297, 4
        %s299 = scalar_lea.vmem %s3, %s298
        %p300 = pneg %p108
        %p301 = pneg %p105
        %p302 = pneg %p129
        %p303 = pneg %p126
        %p304 = pneg %p155
        %p305 = pneg %p152
        %s306 = sand.u32 %s142, 1
        %s307 = sand.u32 %s142, 1
        %s308 = smul.addr %s307, 32
        %s309 = scalar_lea.vmem [#allocation2], %s308
        %p310 = pneg %p181
        %p311 = pneg %p178
        %s312 = sand.u32 %s168, 1
        %s313 = sand.u32 %s168, 1
        %s314 = smul.addr %s313, 8
        %s315 = scalar_lea.vmem [#allocation3], %s314
        %p316 = pneg %p207
        %p317 = pneg %p204
        %p318 = scmp.lt.s32.totalorder %s19, 1
        %s319 = scalar_select %p318, %s19, 1
        %s320 = smul.addr %s319, 8
        %s321 = scalar_lea.vmem %s7, %s320
        %s322 = smul.u32 4, %s19
        %s323 = ssub.s32 6, %s322
        %p324 = scmp.lt.s32.totalorder %s323, 4
        %s325 = scalar_select %p324, %s323, 4
        %s326 = smul.u32 64, %s325
        %p327 = scmp.lt.s32.totalorder %s322, 5
        %s328 = scalar_select %p327, %s322, 5
        %s329 = smul.addr %s328, 4
        %s330 = scalar_lea.vmem %s0, %s329
        %s331 = smul.u32 4, %s19
        %s332 = ssub.s32 6, %s331
        %p333 = scmp.lt.s32.totalorder %s332, 4
        %s334 = scalar_select %p333, %s332, 4
        %s335 = smul.u32 64, %s334
        %s336 = smul.u32 4, %s19
        %s337 = ssub.s32 6, %s336
        %p338 = scmp.lt.s32.totalorder %s337, 4
        %s339 = scalar_select %p338, %s337, 4
        %s340 = smul.u32 64, %s339
        %p341 = scmp.lt.s32.totalorder %s336, 5
        %s342 = scalar_select %p341, %s336, 5
        %s343 = smul.addr %s342, 4
        %s344 = scalar_lea.vmem %s3, %s343
        %s345 = smul.u32 4, %s19
        %s346 = ssub.s32 6, %s345
        %p347 = scmp.lt.s32.totalorder %s346, 4
        %s348 = scalar_select %p347, %s346, 4
        %s349 = smul.u32 64, %s348
        %s350 = smul.u32 4, %s19
        %s351 = ssub.s32 6, %s350
        %p352 = scmp.lt.s32.totalorder %s351, 4
        %s353 = scalar_select %p352, %s351, 4
        %s354 = smul.u32 128, %s353
        %s355 = smul.u32 4, %s19
        %s356 = ssub.s32 6, %s355
        %p357 = scmp.lt.s32.totalorder %s356, 4
        %s358 = scalar_select %p357, %s356, 4
        %s359 = smul.u32 32, %s358
        %p360 = scmp.lt.s32.totalorder %s19, 1
        %s361 = scalar_select %p360, %s19, 1
        %s362 = smul.addr %s361, 8
        %s363 = scalar_lea.vmem %s7, %s362
        %v365 = vld [vmem:[%s330] sm:$0xf]
        %v366 = vld [vmem:[%s330 + $0x4] sm:$0xf]
        %v367 = vld [vmem:[%s330 + $0x8] sm:$0xf]
        %v368 = vld [vmem:[%s330 + $0xc] sm:$0xf]
        %v369 = vld [vmem:[%s1] sm:$0xf]
        %v370 = vld [vmem:[%s1 + $0x4] sm:$0xf]
        %v371 = vld [vmem:[%s1 + $0x8] sm:$0xf]
        %v372 = vld [vmem:[%s1 + $0xc] sm:$0xf]
        %v373 = vld [vmem:[%s2] sm:$0x1]
        %v375 = vlaneseq
        %v376 = vshrl.u32 %v375, 7
        %v377 = vsub.s32 0, %v376
        %v378 = vrot.slane %v373, %v377
        %v384 = vunpack.c.l.b16 %v365
        %v385 = vunpack.c.l.b16 %v366
        %v386 = vunpack.c.l.b16 %v367
        %v387 = vunpack.c.l.b16 %v368
        %v388 = vpack.c.b16 %v385, %v384
        %v389 = vpack.c.b16 %v387, %v386
        %v394 = vunpack.c.l.b16 %v369
        %v395 = vunpack.c.l.b16 %v370
        %v396 = vunpack.c.l.b16 %v371
        %v397 = vunpack.c.l.b16 %v372
        %v398 = vpack.c.b16 %v395, %v394
        %v399 = vpack.c.b16 %v397, %v396
        %vm402 = vcmask 261120
        %v404 = vsel %vm402, %v388, 0
        %v407 = vsel %vm402, %v389, 0
        %409 = vmatprep.subr.bf16.mxu0 0
        %410 = vmatpush1.bf16.msra.mxu0 %v398
        %411 = vmatprep.subr.bf16.mxu0 0
        %412 = vmatpush1.bf16.msra.mxu0 %v399
        %413 = vmatprep.subr.bf16.mxu0 0
        %414 = vmatpush1.bf16.msra.mxu0 0
        %415 = vmatprep.subr.bf16.mxu0 0
        %416 = vmatpush1.bf16.msra.mxu0 0
        %417 = vmatprep.subr.bf16.mxu0 0
        %418 = vmatpush1.bf16.msra.mxu0 0
        %419 = vmatprep.subr.bf16.mxu0 0
        %420 = vmatpush1.bf16.msra.mxu0 0
        %421 = vmatprep.subr.bf16.mxu0 0
        %422 = vmatpush1.bf16.msra.mxu0 0
        %423 = vmatprep.subr.bf16.mxu0 0
        %424 = vmatpush1.bf16.msra.mxu0 0
        %425 = vmatprep.subr.bf16.mxu0 0
        %426 = vmatpush1.bf16.msra.mxu0 0
        %427 = vmatprep.subr.bf16.mxu0 0
        %428 = vmatpush1.bf16.msra.mxu0 0
        %429 = vmatprep.subr.bf16.mxu0 0
        %430 = vmatpush1.bf16.msra.mxu0 0
        %431 = vmatprep.subr.bf16.mxu0 0
        %432 = vmatpush1.bf16.msra.mxu0 0
        %433 = vmatprep.subr.bf16.mxu0 0
        %434 = vmatpush1.bf16.msra.mxu0 0
        %435 = vmatprep.subr.bf16.mxu0 0
        %436 = vmatpush1.bf16.msra.mxu0 0
        %437 = vmatprep.subr.bf16.mxu0 0
        %438 = vmatpush1.bf16.msra.mxu0 0
        %439 = vmatprep.subr.bf16.mxu0 0
        %440 = vmatpush1.bf16.msra.mxu0 0
        %441 = vmatprep.mubr.bf16.mxu0 0
        %442 = vmatmul.mubr.bf16.gmra.mrb[0].mxu0 %v404
        %v443 = vpop.f32.mrb[0].mxu0
        %v444 = vadd.f32 %v378, %v443
        %v445 = vpop.f32.mrb[0].mxu0
        %v446 = vpop.f32.mrb[0].mxu0
        %v447 = vadd.f32 %v378, %v446
        %v448 = vpop.f32.mrb[0].mxu0
        %449 = vmatprep.mubr.bf16.mxu0 0
        %450 = vmatmul.mubr.bf16.gmra.mrb[0].mxu0 %v407
        %v451 = vpop.f32.mrb[0].mxu0
        %v452 = vadd.f32 %v378, %v451
        %v453 = vpop.f32.mrb[0].mxu0
        %v454 = vpop.f32.mrb[0].mxu0
        %v455 = vadd.f32 %v378, %v454
        %v456 = vpop.f32.mrb[0].mxu0
        %457 = vdwg.mxu0
        %458 = vst [vmem:[%s309] sm:$0xff] %v444
        %459 = vst [vmem:[%s309 + $0x8] sm:$0xff] %v447
        %460 = vst [vmem:[%s309 + $0x10] sm:$0xff] %v452
        %461 = vst [vmem:[%s309 + $0x18] sm:$0xff] %v455
        %v462 = vlaneseq
        %v463 = vand.u32 %v462, 127
        %v464 = vlaneseq
        %v465 = vshrl.u32 %v464, 7
        %v466 = vadd.s32 %v465, 8
        %v467 = vadd.s32 %v465, 16
        %v468 = vadd.s32 %v465, 24
        %s469 = smul.u32 %s19, 32
        %v470 = vstv %s469
        %v471 = vadd.s32 %v465, %v470
        %v472 = vadd.s32 %v466, %v470
        %v473 = vadd.s32 %v467, %v470
        %v474 = vadd.s32 %v468, %v470
        %vm475 = vcmp.lt.s32.totalorder %v463, 12
        %vm476 = vcmp.lt.s32.totalorder %v471, 48
        %vm477 = vcmp.lt.s32.totalorder %v472, 48
        %vm478 = vcmp.lt.s32.totalorder %v473, 48
        %vm479 = vcmp.lt.s32.totalorder %v474, 48
        %vm480 = vmand %vm475, %vm476
        %vm481 = vmand %vm475, %vm477
        %vm482 = vmand %vm475, %vm478
        %vm483 = vmand %vm475, %vm479
        %v484 = vld [vmem:[%s344] sm:$0xf]
        %v485 = vld [vmem:[%s344 + $0x4] sm:$0xf]
        %v486 = vld [vmem:[%s344 + $0x8] sm:$0xf]
        %v487 = vld [vmem:[%s344 + $0xc] sm:$0xf]
        %v488 = vunpack.c.l.bf16 %v484
        %v489 = vunpack.c.l.bf16 %v485
        %v490 = vunpack.c.l.bf16 %v486
        %v491 = vunpack.c.l.bf16 %v487
        %v492 = vsel %vm480, %v488, 0.0
        %v493 = vsel %vm481, %v489, 0.0
        %v494 = vsel %vm482, %v490, 0.0
        %v495 = vsel %vm483, %v491, 0.0
        %v496 = vmax.f32 %v444, 0.0
        %v497 = vmax.f32 %v447, 0.0
        %v498 = vmax.f32 %v452, 0.0
        %v499 = vmax.f32 %v455, 0.0
        %v500 = vmul.f32 %v444, %v492
        %v501 = vmul.f32 %v447, %v493
        %v502 = vmul.f32 %v452, %v494
        %v503 = vmul.f32 %v455, %v495
        %v504 = vsub.f32 %v496, %v500
        %v505 = vsub.f32 %v497, %v501
        %v506 = vsub.f32 %v498, %v502
        %v507 = vsub.f32 %v499, %v503
        %v508 = vand.u32 2147483647, %v444
        %v509 = vand.u32 2147483647, %v447
        %v510 = vand.u32 2147483647, %v452
        %v511 = vand.u32 2147483647, %v455
        %v512 = vsub.f32 0.0, %v508
        %v513 = vsub.f32 0.0, %v509
        %v514 = vsub.f32 0.0, %v510
        %v515 = vsub.f32 0.0, %v511
        %v516 = vmul.f32 %v512, 1.442695
        %v517 = vpow.pop %v516
        %v518 = vmul.f32 %v513, 1.442695
        %v519 = vpow.pop %v518
        %v520 = vmul.f32 %v514, 1.442695
        %v521 = vpow.pop %v520
        %v522 = vmul.f32 %v515, 1.442695
        %v523 = vpow.pop %v522
        %v524 = vadd.f32 %v517, 1.0
        %v525 = vlog2.pop %v524
        %v526 = vmul.f32 %v525, 0.6931472
        %v527 = vmul.f32 -0.5, %v517
        %v528 = vadd.f32 %v527, 1.0
        %v529 = vmul.f32 %v528, %v517
        %v530 = vand.u32 2147483647, %v517
        %vm531 = vcmp.lt.f32.partialorder %v530, 0.0004427343
        %v532 = vsel %vm531, %v529, %v526
        %v533 = vadd.f32 %v519, 1.0
        %v534 = vlog2.pop %v533
        %v535 = vmul.f32 %v534, 0.6931472
        %v536 = vmul.f32 -0.5, %v519
        %v537 = vadd.f32 %v536, 1.0
        %v538 = vmul.f32 %v537, %v519
        %v539 = vand.u32 2147483647, %v519
        %vm540 = vcmp.lt.f32.partialorder %v539, 0.0004427343
        %v541 = vsel %vm540, %v538, %v535
        %v542 = vadd.f32 %v521, 1.0
        %v543 = vlog2.pop %v542
        %v544 = vmul.f32 %v543, 0.6931472
        %v545 = vmul.f32 -0.5, %v521
        %v546 = vadd.f32 %v545, 1.0
        %v547 = vmul.f32 %v546, %v521
        %v548 = vand.u32 2147483647, %v521
        %vm549 = vcmp.lt.f32.partialorder %v548, 0.0004427343
        %v550 = vsel %vm549, %v547, %v544
        %v551 = vadd.f32 %v523, 1.0
        %v552 = vlog2.pop %v551
        %v553 = vmul.f32 %v552, 0.6931472
        %v554 = vmul.f32 -0.5, %v523
        %v555 = vadd.f32 %v554, 1.0
        %v556 = vmul.f32 %v555, %v523
        %v557 = vand.u32 2147483647, %v523
        %vm558 = vcmp.lt.f32.partialorder %v557, 0.0004427343
        %v559 = vsel %vm558, %v556, %v553
        %v560 = vadd.f32 %v504, %v532
        %v561 = vadd.f32 %v505, %v541
        %v562 = vadd.f32 %v506, %v550
        %v563 = vadd.f32 %v507, %v559
        %v564 = vsel %vm480, %v560, 0.0
        %v565 = vsel %vm481, %v561, 0.0
        %v566 = vsel %vm482, %v562, 0.0
        %v567 = vsel %vm483, %v563, 0.0
        %v568 = vadd.f32 %v564, %v565
        %v569 = vadd.f32 %v568, %v566
        %v570 = vadd.f32 %v569, %v567
        %571 = vadd.xlane.f32.xlu0 %v570
        %v572 = vpop.xlane.xlu0 %571
        %v573 = vrot.slane %v572, 4
        %v574 = vadd.f32 %v572, %v573
        %v575 = vrot.slane %v574, 2
        %v576 = vadd.f32 %v574, %v575
        %v577 = vrot.slane %v576, 1
        %v578 = vadd.f32 %v576, %v577
        %s579 = vtos %v578
        %v580 = vld [vmem:[%s4] sm:$0x1]
        %v582 = vlaneseq
        %v583 = vshrl.u32 %v582, 7
        %v584 = vsub.s32 0, %v583
        %v585 = vrot.slane %v580, %v584
        %v587 = vmul.f32 %v564, %v585
        %v588 = vmul.f32 %v565, %v585
        %v589 = vmul.f32 %v566, %v585
        %v590 = vmul.f32 %v567, %v585
        %v591 = vadd.f32 %v587, %v588
        %v592 = vadd.f32 %v591, %v589
        %v593 = vadd.f32 %v592, %v590
        %594 = vadd.xlane.f32.xlu0 %v593
        %v595 = vpop.xlane.xlu0 %594
        %v596 = vrot.slane %v595, 4
        %v597 = vadd.f32 %v595, %v596
        %v598 = vrot.slane %v597, 2
        %v599 = vadd.f32 %v597, %v598
        %v600 = vrot.slane %v599, 1
        %v601 = vadd.f32 %v599, %v600
        %s602 = vtos %v601
        %vm603 = vcmp.ge.s32.totalorder %v463, 0
        %vm604 = vcmp.ge.s32.totalorder %v463, 3
        %vm605 = vcmp.ge.s32.totalorder %v463, 7
        %vm606 = vcmp.lt.s32.totalorder %v463, 3
        %vm607 = vcmp.lt.s32.totalorder %v463, 7
        %vm608 = vmand %vm603, %vm606
        %vm609 = vmand %vm604, %vm607
        %vm610 = vmand %vm605, %vm475
        %v611 = vsel %vm608, 1, 0
        %v612 = vsel %vm609, 1, 0
        %v613 = vsel %vm610, 1, 0
        %vm614 = vcmp.eq.s32.totalorder %v611, 1
        %vm615 = vcmp.eq.s32.totalorder %v612, 1
        %vm616 = vcmp.eq.s32.totalorder %v613, 1
        %v617 = vsel %vm614, %v444, -inf
        %v618 = vsel %vm614, %v447, -inf
        %v619 = vsel %vm614, %v452, -inf
        %v620 = vsel %vm614, %v455, -inf
        %v621 = vsel %vm615, %v444, -inf
        %v622 = vsel %vm615, %v447, -inf
        %v623 = vsel %vm615, %v452, -inf
        %v624 = vsel %vm615, %v455, -inf
        %v625 = vsel %vm616, %v444, -inf
        %v626 = vsel %vm616, %v447, -inf
        %v627 = vsel %vm616, %v452, -inf
        %v628 = vsel %vm616, %v455, -inf
        %629 = vmax.xlane.f32.xlu0 %v617
        %v630 = vpop.xlane.xlu0 %629
        %631 = vmax.xlane.f32.xlu0 %v618
        %v632 = vpop.xlane.xlu0 %631
        %633 = vmax.xlane.f32.xlu0 %v619
        %v634 = vpop.xlane.xlu0 %633
        %635 = vmax.xlane.f32.xlu0 %v620
        %v636 = vpop.xlane.xlu0 %635
        %637 = vmax.xlane.f32.xlu0 %v621
        %v638 = vpop.xlane.xlu0 %637
        %639 = vmax.xlane.f32.xlu0 %v622
        %v640 = vpop.xlane.xlu0 %639
        %641 = vmax.xlane.f32.xlu0 %v623
        %v642 = vpop.xlane.xlu0 %641
        %643 = vmax.xlane.f32.xlu0 %v624
        %v644 = vpop.xlane.xlu0 %643
        %645 = vmax.xlane.f32.xlu0 %v625
        %v646 = vpop.xlane.xlu0 %645
        %647 = vmax.xlane.f32.xlu0 %v626
        %v648 = vpop.xlane.xlu0 %647
        %649 = vmax.xlane.f32.xlu0 %v627
        %v650 = vpop.xlane.xlu0 %649
        %651 = vmax.xlane.f32.xlu0 %v628
        %v652 = vpop.xlane.xlu0 %651
        %vm653 = vcmp.eq.f32.partialorder %v617, %v630
        %vm654 = vcmp.eq.f32.partialorder %v618, %v632
        %vm655 = vcmp.eq.f32.partialorder %v619, %v634
        %vm656 = vcmp.eq.f32.partialorder %v620, %v636
        %vm657 = vcmp.eq.f32.partialorder %v621, %v638
        %vm658 = vcmp.eq.f32.partialorder %v622, %v640
        %vm659 = vcmp.eq.f32.partialorder %v623, %v642
        %vm660 = vcmp.eq.f32.partialorder %v624, %v644
        %vm661 = vcmp.eq.f32.partialorder %v625, %v646
        %vm662 = vcmp.eq.f32.partialorder %v626, %v648
        %vm663 = vcmp.eq.f32.partialorder %v627, %v650
        %vm664 = vcmp.eq.f32.partialorder %v628, %v652
        %vm665 = vmand %vm653, %vm614
        %vm666 = vmand %vm654, %vm614
        %vm667 = vmand %vm655, %vm614
        %vm668 = vmand %vm656, %vm614
        %vm669 = vmand %vm657, %vm615
        %vm670 = vmand %vm658, %vm615
        %vm671 = vmand %vm659, %vm615
        %vm672 = vmand %vm660, %vm615
        %vm673 = vmand %vm661, %vm616
        %vm674 = vmand %vm662, %vm616
        %vm675 = vmand %vm663, %vm616
        %vm676 = vmand %vm664, %vm616
        %v677 = vsel %vm665, %v463, 128
        %v678 = vsel %vm666, %v463, 128
        %v679 = vsel %vm667, %v463, 128
        %v680 = vsel %vm668, %v463, 128
        %v681 = vsel %vm669, %v463, 128
        %v682 = vsel %vm670, %v463, 128
        %v683 = vsel %vm671, %v463, 128
        %v684 = vsel %vm672, %v463, 128
        %v685 = vsel %vm673, %v463, 128
        %v686 = vsel %vm674, %v463, 128
        %v687 = vsel %vm675, %v463, 128
        %v688 = vsel %vm676, %v463, 128
        %v689 = vand.u32 %v677, 65535
        %v690 = vshra.s32 %v677, 16
        %v691 = vcvt.s32.f32 %v689
        %v692 = vcvt.s32.f32 %v690
        %693 = vmin.xlane.f32.xlu0 %v692
        %v694 = vpop.xlane.xlu0 %693
        %vm695 = vcmp.eq.f32.partialorder %v692, %v694
        %v696 = vsel %vm695, %v691, inf
        %697 = vmin.xlane.f32.xlu0 %v696
        %v698 = vpop.xlane.xlu0 %697
        %v699 = vcvt.f32.s32 %v698
        %v700 = vcvt.f32.s32 %v694
        %v701 = vshll.u32 %v700, 16
        %v702 = vadd.s32 %v701, %v699
        %v703 = vand.u32 %v678, 65535
        %v704 = vshra.s32 %v678, 16
        %v705 = vcvt.s32.f32 %v703
        %v706 = vcvt.s32.f32 %v704
        %707 = vmin.xlane.f32.xlu0 %v706
        %v708 = vpop.xlane.xlu0 %707
        %vm709 = vcmp.eq.f32.partialorder %v706, %v708
        %v710 = vsel %vm709, %v705, inf
        %711 = vmin.xlane.f32.xlu0 %v710
        %v712 = vpop.xlane.xlu0 %711
        %v713 = vcvt.f32.s32 %v712
        %v714 = vcvt.f32.s32 %v708
        %v715 = vshll.u32 %v714, 16
        %v716 = vadd.s32 %v715, %v713
        %v717 = vand.u32 %v679, 65535
        %v718 = vshra.s32 %v679, 16
        %v719 = vcvt.s32.f32 %v717
        %v720 = vcvt.s32.f32 %v718
        %721 = vmin.xlane.f32.xlu0 %v720
        %v722 = vpop.xlane.xlu0 %721
        %vm723 = vcmp.eq.f32.partialorder %v720, %v722
        %v724 = vsel %vm723, %v719, inf
        %725 = vmin.xlane.f32.xlu0 %v724
        %v726 = vpop.xlane.xlu0 %725
        %v727 = vcvt.f32.s32 %v726
        %v728 = vcvt.f32.s32 %v722
        %v729 = vshll.u32 %v728, 16
        %v730 = vadd.s32 %v729, %v727
        %v731 = vand.u32 %v680, 65535
        %v732 = vshra.s32 %v680, 16
        %v733 = vcvt.s32.f32 %v731
        %v734 = vcvt.s32.f32 %v732
        %735 = vmin.xlane.f32.xlu0 %v734
        %v736 = vpop.xlane.xlu0 %735
        %vm737 = vcmp.eq.f32.partialorder %v734, %v736
        %v738 = vsel %vm737, %v733, inf
        %739 = vmin.xlane.f32.xlu0 %v738
        %v740 = vpop.xlane.xlu0 %739
        %v741 = vcvt.f32.s32 %v740
        %v742 = vcvt.f32.s32 %v736
        %v743 = vshll.u32 %v742, 16
        %v744 = vadd.s32 %v743, %v741
        %v745 = vand.u32 %v681, 65535
        %v746 = vshra.s32 %v681, 16
        %v747 = vcvt.s32.f32 %v745
        %v748 = vcvt.s32.f32 %v746
        %749 = vmin.xlane.f32.xlu0 %v748
        %v750 = vpop.xlane.xlu0 %749
        %vm751 = vcmp.eq.f32.partialorder %v748, %v750
        %v752 = vsel %vm751, %v747, inf
        %753 = vmin.xlane.f32.xlu0 %v752
        %v754 = vpop.xlane.xlu0 %753
        %v755 = vcvt.f32.s32 %v754
        %v756 = vcvt.f32.s32 %v750
        %v757 = vshll.u32 %v756, 16
        %v758 = vadd.s32 %v757, %v755
        %v759 = vand.u32 %v682, 65535
        %v760 = vshra.s32 %v682, 16
        %v761 = vcvt.s32.f32 %v759
        %v762 = vcvt.s32.f32 %v760
        %763 = vmin.xlane.f32.xlu0 %v762
        %v764 = vpop.xlane.xlu0 %763
        %vm765 = vcmp.eq.f32.partialorder %v762, %v764
        %v766 = vsel %vm765, %v761, inf
        %767 = vmin.xlane.f32.xlu0 %v766
        %v768 = vpop.xlane.xlu0 %767
        %v769 = vcvt.f32.s32 %v768
        %v770 = vcvt.f32.s32 %v764
        %v771 = vshll.u32 %v770, 16
        %v772 = vadd.s32 %v771, %v769
        %v773 = vand.u32 %v683, 65535
        %v774 = vshra.s32 %v683, 16
        %v775 = vcvt.s32.f32 %v773
        %v776 = vcvt.s32.f32 %v774
        %777 = vmin.xlane.f32.xlu0 %v776
        %v778 = vpop.xlane.xlu0 %777
        %vm779 = vcmp.eq.f32.partialorder %v776, %v778
        %v780 = vsel %vm779, %v775, inf
        %781 = vmin.xlane.f32.xlu0 %v780
        %v782 = vpop.xlane.xlu0 %781
        %v783 = vcvt.f32.s32 %v782
        %v784 = vcvt.f32.s32 %v778
        %v785 = vshll.u32 %v784, 16
        %v786 = vadd.s32 %v785, %v783
        %v787 = vand.u32 %v684, 65535
        %v788 = vshra.s32 %v684, 16
        %v789 = vcvt.s32.f32 %v787
        %v790 = vcvt.s32.f32 %v788
        %791 = vmin.xlane.f32.xlu0 %v790
        %v792 = vpop.xlane.xlu0 %791
        %vm793 = vcmp.eq.f32.partialorder %v790, %v792
        %v794 = vsel %vm793, %v789, inf
        %795 = vmin.xlane.f32.xlu0 %v794
        %v796 = vpop.xlane.xlu0 %795
        %v797 = vcvt.f32.s32 %v796
        %v798 = vcvt.f32.s32 %v792
        %v799 = vshll.u32 %v798, 16
        %v800 = vadd.s32 %v799, %v797
        %v801 = vand.u32 %v685, 65535
        %v802 = vshra.s32 %v685, 16
        %v803 = vcvt.s32.f32 %v801
        %v804 = vcvt.s32.f32 %v802
        %805 = vmin.xlane.f32.xlu0 %v804
        %v806 = vpop.xlane.xlu0 %805
        %vm807 = vcmp.eq.f32.partialorder %v804, %v806
        %v808 = vsel %vm807, %v803, inf
        %809 = vmin.xlane.f32.xlu0 %v808
        %v810 = vpop.xlane.xlu0 %809
        %v811 = vcvt.f32.s32 %v810
        %v812 = vcvt.f32.s32 %v806
        %v813 = vshll.u32 %v812, 16
        %v814 = vadd.s32 %v813, %v811
        %v815 = vand.u32 %v686, 65535
        %v816 = vshra.s32 %v686, 16
        %v817 = vcvt.s32.f32 %v815
        %v818 = vcvt.s32.f32 %v816
        %819 = vmin.xlane.f32.xlu0 %v818
        %v820 = vpop.xlane.xlu0 %819
        %vm821 = vcmp.eq.f32.partialorder %v818, %v820
        %v822 = vsel %vm821, %v817, inf
        %823 = vmin.xlane.f32.xlu0 %v822
        %v824 = vpop.xlane.xlu0 %823
        %v825 = vcvt.f32.s32 %v824
        %v826 = vcvt.f32.s32 %v820
        %v827 = vshll.u32 %v826, 16
        %v828 = vadd.s32 %v827, %v825
        %v829 = vand.u32 %v687, 65535
        %v830 = vshra.s32 %v687, 16
        %v831 = vcvt.s32.f32 %v829
        %v832 = vcvt.s32.f32 %v830
        %833 = vmin.xlane.f32.xlu0 %v832
        %v834 = vpop.xlane.xlu0 %833
        %vm835 = vcmp.eq.f32.partialorder %v832, %v834
        %v836 = vsel %vm835, %v831, inf
        %837 = vmin.xlane.f32.xlu0 %v836
        %v838 = vpop.xlane.xlu0 %837
        %v839 = vcvt.f32.s32 %v838
        %v840 = vcvt.f32.s32 %v834
        %v841 = vshll.u32 %v840, 16
        %v842 = vadd.s32 %v841, %v839
        %v843 = vand.u32 %v688, 65535
        %v844 = vshra.s32 %v688, 16
        %v845 = vcvt.s32.f32 %v843
        %v846 = vcvt.s32.f32 %v844
        %847 = vmin.xlane.f32.xlu0 %v846
        %v848 = vpop.xlane.xlu0 %847
        %vm849 = vcmp.eq.f32.partialorder %v846, %v848
        %v850 = vsel %vm849, %v845, inf
        %851 = vmin.xlane.f32.xlu0 %v850
        %v852 = vpop.xlane.xlu0 %851
        %v853 = vcvt.f32.s32 %v852
        %v854 = vcvt.f32.s32 %v848
        %v855 = vshll.u32 %v854, 16
        %v856 = vadd.s32 %v855, %v853
        %vm857 = vcmp.eq.s32.totalorder %v463, %v702
        %vm858 = vcmp.eq.s32.totalorder %v463, %v716
        %vm859 = vcmp.eq.s32.totalorder %v463, %v730
        %vm860 = vcmp.eq.s32.totalorder %v463, %v744
        %vm861 = vcmp.eq.s32.totalorder %v463, %v758
        %vm862 = vcmp.eq.s32.totalorder %v463, %v772
        %vm863 = vcmp.eq.s32.totalorder %v463, %v786
        %vm864 = vcmp.eq.s32.totalorder %v463, %v800
        %vm865 = vcmp.eq.s32.totalorder %v463, %v814
        %vm866 = vcmp.eq.s32.totalorder %v463, %v828
        %vm867 = vcmp.eq.s32.totalorder %v463, %v842
        %vm868 = vcmp.eq.s32.totalorder %v463, %v856
        %v869 = vsel %vm857, 1, 0
        %v870 = vsel %vm858, 1, 0
        %v871 = vsel %vm859, 1, 0
        %v872 = vsel %vm860, 1, 0
        %v873 = vsel %vm861, 1, 0
        %v874 = vsel %vm862, 1, 0
        %v875 = vsel %vm863, 1, 0
        %v876 = vsel %vm864, 1, 0
        %v877 = vsel %vm865, 1, 0
        %v878 = vsel %vm866, 1, 0
        %v879 = vsel %vm867, 1, 0
        %v880 = vsel %vm868, 1, 0
        %v881 = vadd.s32 %v869, %v873
        %v882 = vadd.s32 %v881, %v877
        %v883 = vadd.s32 %v870, %v874
        %v884 = vadd.s32 %v883, %v878
        %v885 = vadd.s32 %v871, %v875
        %v886 = vadd.s32 %v885, %v879
        %v887 = vadd.s32 %v872, %v876
        %v888 = vadd.s32 %v887, %v880
        %v889 = vpack.c.b16 %v882, %v882
        %v890 = vpack.c.b8 %v889, %v889
        %v891 = vpack.c.b16 %v884, %v884
        %v892 = vpack.c.b8 %v891, %v891
        %v893 = vpack.c.b16 %v886, %v886
        %v894 = vpack.c.b8 %v893, %v893
        %v895 = vpack.c.b16 %v888, %v888
        %v896 = vpack.c.b8 %v895, %v895
        %897 = vst [vmem:[%s315] sm:$0x3] %v890
        %898 = vst [vmem:[%s315 + $0x2] sm:$0x3] %v892
        %899 = vst [vmem:[%s315 + $0x4] sm:$0x3] %v894
        %900 = vst [vmem:[%s315 + $0x6] sm:$0x3] %v896
        %vm901 = vcmp.gt.f32.partialorder %v492, 0.5
        %vm902 = vcmp.gt.f32.partialorder %v493, 0.5
        %vm903 = vcmp.gt.f32.partialorder %v494, 0.5
        %vm904 = vcmp.gt.f32.partialorder %v495, 0.5
        %v905 = vsel %vm901, 1, 0
        %v906 = vsel %vm902, 1, 0
        %v907 = vsel %vm903, 1, 0
        %v908 = vsel %vm904, 1, 0
        %vm909 = vcmp.eq.s32.totalorder %v882, 1
        %vm910 = vcmp.eq.s32.totalorder %v884, 1
        %vm911 = vcmp.eq.s32.totalorder %v886, 1
        %vm912 = vcmp.eq.s32.totalorder %v888, 1
        %vm913 = vcmp.eq.s32.totalorder %v905, 1
        %vm914 = vcmp.eq.s32.totalorder %v906, 1
        %vm915 = vcmp.eq.s32.totalorder %v907, 1
        %vm916 = vcmp.eq.s32.totalorder %v908, 1
        %vm917 = vmand %vm909, %vm913
        %vm918 = vmand %vm910, %vm914
        %vm919 = vmand %vm911, %vm915
        %vm920 = vmand %vm912, %vm916
        %v921 = vsel %vm917, 1, 0
        %v922 = vsel %vm918, 1, 0
        %v923 = vsel %vm919, 1, 0
        %v924 = vsel %vm920, 1, 0
        %v925 = vcvt.s32.f32 %v921
        %v926 = vcvt.s32.f32 %v922
        %v927 = vcvt.s32.f32 %v923
        %v928 = vcvt.s32.f32 %v924
        %v929 = vadd.f32 %v925, %v926
        %v930 = vadd.f32 %v929, %v927
        %v931 = vadd.f32 %v930, %v928
        %932 = vadd.xlane.f32.xlu0 %v931
        %v933 = vpop.xlane.xlu0 %932
        %v934 = vrot.slane %v933, 4
        %v935 = vadd.f32 %v933, %v934
        %v936 = vrot.slane %v935, 2
        %v937 = vadd.f32 %v935, %v936
        %v938 = vrot.slane %v937, 1
        %v939 = vadd.f32 %v937, %v938
        %s940 = vtos %v939
        %v941 = vadd.f32 %v492, %v493
        %v942 = vadd.f32 %v941, %v494
        %v943 = vadd.f32 %v942, %v495
        %944 = vadd.xlane.f32.xlu0 %v943
        %v945 = vpop.xlane.xlu0 %944
        %v946 = vrot.slane %v945, 4
        %v947 = vadd.f32 %v945, %v946
        %v948 = vrot.slane %v947, 2
        %v949 = vadd.f32 %v947, %v948
        %v950 = vrot.slane %v949, 1
        %v951 = vadd.f32 %v949, %v950
        %s952 = vtos %v951
        %vm953 = vcmp.ne.s32.totalorder %v882, %v905
        %vm954 = vcmp.ne.s32.totalorder %v884, %v906
        %vm955 = vcmp.ne.s32.totalorder %v886, %v907
        %vm956 = vcmp.ne.s32.totalorder %v888, %v908
        %vm957 = vmxor %vm476, 1
        %vm958 = vmxor %vm477, 1
        %vm959 = vmxor %vm478, 1
        %vm960 = vmxor %vm479, 1
        %vm961 = vmor %vm953, %vm957
        %vm962 = vmor %vm954, %vm958
        %vm963 = vmor %vm955, %vm959
        %vm964 = vmor %vm956, %vm960
        %v965 = vsel %vm961, 1, 0
        %v966 = vsel %vm962, 1, 0
        %v967 = vsel %vm963, 1, 0
        %v968 = vsel %vm964, 1, 0
        %v969 = vand.u32 %v965, 65535
        %v970 = vshrl.u32 %v965, 16
        %v971 = vcvt.s32.f32 %v969
        %v972 = vcvt.s32.f32 %v970
        %973 = vadd.xlane.f32.xlu0 %v971
        %v974 = vpop.xlane.xlu0 %973
        %975 = vadd.xlane.f32.xlu0 %v972
        %v976 = vpop.xlane.xlu0 %975
        %v977 = vcvt.f32.s32 %v974
        %v978 = vcvt.f32.s32 %v976
        %v979 = vshll.u32 %v978, 16
        %v980 = vadd.s32 %v979, %v977
        %v981 = vand.u32 %v966, 65535
        %v982 = vshrl.u32 %v966, 16
        %v983 = vcvt.s32.f32 %v981
        %v984 = vcvt.s32.f32 %v982
        %985 = vadd.xlane.f32.xlu0 %v983
        %v986 = vpop.xlane.xlu0 %985
        %987 = vadd.xlane.f32.xlu0 %v984
        %v988 = vpop.xlane.xlu0 %987
        %v989 = vcvt.f32.s32 %v986
        %v990 = vcvt.f32.s32 %v988
        %v991 = vshll.u32 %v990, 16
        %v992 = vadd.s32 %v991, %v989
        %v993 = vand.u32 %v967, 65535
        %v994 = vshrl.u32 %v967, 16
        %v995 = vcvt.s32.f32 %v993
        %v996 = vcvt.s32.f32 %v994
        %997 = vadd.xlane.f32.xlu0 %v995
        %v998 = vpop.xlane.xlu0 %997
        %999 = vadd.xlane.f32.xlu0 %v996
        %v1000 = vpop.xlane.xlu0 %999
        %v1001 = vcvt.f32.s32 %v998
        %v1002 = vcvt.f32.s32 %v1000
        %v1003 = vshll.u32 %v1002, 16
        %v1004 = vadd.s32 %v1003, %v1001
        %v1005 = vand.u32 %v968, 65535
        %v1006 = vshrl.u32 %v968, 16
        %v1007 = vcvt.s32.f32 %v1005
        %v1008 = vcvt.s32.f32 %v1006
        %1009 = vadd.xlane.f32.xlu0 %v1007
        %v1010 = vpop.xlane.xlu0 %1009
        %1011 = vadd.xlane.f32.xlu0 %v1008
        %v1012 = vpop.xlane.xlu0 %1011
        %v1013 = vcvt.f32.s32 %v1010
        %v1014 = vcvt.f32.s32 %v1012
        %v1015 = vshll.u32 %v1014, 16
        %v1016 = vadd.s32 %v1015, %v1013
        %vm1017 = vcmp.eq.s32.totalorder %v980, 0
        %vm1018 = vcmp.eq.s32.totalorder %v992, 0
        %vm1019 = vcmp.eq.s32.totalorder %v1004, 0
        %vm1020 = vcmp.eq.s32.totalorder %v1016, 0
        %v1021 = vsel %vm1017, 1, 0
        %v1022 = vsel %vm1018, 1, 0
        %v1023 = vsel %vm1019, 1, 0
        %v1024 = vsel %vm1020, 1, 0
        %v1025 = vcvt.s32.f32 %v1021
        %v1026 = vcvt.s32.f32 %v1022
        %v1027 = vcvt.s32.f32 %v1023
        %v1028 = vcvt.s32.f32 %v1024
        %vm1029 = vcmask 7168
        %v1030 = vsel %vm1029, %v1025, 0.0
        %v1031 = vsel %vm1029, %v1026, 0.0
        %v1032 = vadd.f32 %v1030, %v1031
        %v1033 = vsel %vm1029, %v1027, 0.0
        %v1034 = vadd.f32 %v1032, %v1033
        %v1035 = vsel %vm1029, %v1028, 0.0
        %v1036 = vadd.f32 %v1034, %v1035
        %1037 = vadd.xlane.f32.xlu0 %v1036
        %v1038 = vpop.xlane.xlu0 %1037
        %v1039 = vrot.slane %v1038, 4
        %v1040 = vadd.f32 %v1038, %v1039
        %v1041 = vrot.slane %v1040, 2
        %v1042 = vadd.f32 %v1040, %v1041
        %v1043 = vrot.slane %v1042, 1
        %v1044 = vadd.f32 %v1042, %v1043
        %s1045 = vtos %v1044
        %vm1046 = vcmp.eq.s32.totalorder %v465, 0
        %vm1047 = vcmp.eq.s32.totalorder %v463, 0
        %vm1048 = vmand %vm1046, %vm1047
        %v1049 = vstv %s579
        %v1050 = vsel %vm1048, %v1049, 0.0
        %vm1051 = vcmp.eq.s32.totalorder %v463, 1
        %vm1052 = vmand %vm1046, %vm1051
        %v1053 = vstv %s602
        %v1054 = vsel %vm1052, %v1053, 0.0
        %v1055 = vadd.f32 %v1050, %v1054
        %vm1056 = vcmp.eq.s32.totalorder %v463, 2
        %vm1057 = vmand %vm1046, %vm1056
        %v1058 = vstv %s940
        %v1059 = vsel %vm1057, %v1058, 0.0
        %v1060 = vadd.f32 %v1055, %v1059
        %vm1061 = vcmp.eq.s32.totalorder %v463, 3
        %vm1062 = vmand %vm1046, %vm1061
        %v1063 = vstv %s952
        %v1064 = vsel %vm1062, %v1063, 0.0
        %v1065 = vadd.f32 %v1060, %v1064
        %vm1066 = vcmp.eq.s32.totalorder %v463, 4
        %vm1067 = vmand %vm1046, %vm1066
        %v1068 = vstv %s1045
        %v1069 = vsel %vm1067, %v1068, 0.0
        %v1070 = vadd.f32 %v1065, %v1069
        %1071 = vst [vmem:[%s363] sm:$0xff] %v1070
        %s1072 = sand.u32 %s142, 1
        %s1073 = sand.u32 %s142, 1
        %s1074 = smul.addr %s1073, 32
        %s1075 = scalar_lea.vmem [#allocation2], %s1074
        %s1076 = sand.u32 %s168, 1
        %s1077 = sand.u32 %s168, 1
        %s1078 = smul.addr %s1077, 8
        %s1079 = scalar_lea.vmem [#allocation3], %s1078
        %p1080 = scmp.lt.s32.totalorder %s19, 1
        %s1081 = scalar_select %p1080, %s19, 1
        %s1082 = smul.addr %s1081, 8
        %s1083 = scalar_lea.vmem %s7, %s1082
        // Predicated region
        $region41: #{base_clf_forward.1} parent=39 // pred_check
          %p1084 = pneg %p152
        $region42: #{base_clf_forward.1} parent=39 // pred_check_branch
          %1086 = sbr.rel (%p1084) target = $region44
        $region43: #{base_clf_forward.1} parent=39 // pred_region
          %s1087 = smul.u32 4, %s19
          %s1088 = ssub.s32 6, %s1087
          %p1089 = scmp.lt.s32.totalorder %s1088, 4
          %s1090 = scalar_select %p1089, %s1088, 4
          %s1091 = smul.u32 128, %s1090
          %p1092 = scmp.ne.s32.totalorder 0, %s1091
          %s1093 = smul.addr %s1087, 8
          %s1094 = scalar_lea.vmem %s5, %s1093
          // Predicated region
          $region45: #{base_clf_forward.1} parent=43 // pred_check
            %p1095 = pneg %p1092
          $region46: #{base_clf_forward.1} parent=43 // pred_check_branch
            %1097 = sbr.rel (%p1095) target = $region48
          $region47: #{base_clf_forward.1} parent=43 // pred_region
            // Predicated region
            $region49: #{base_clf_forward.1} parent=47 // pred_check
              _
            $region50: #{base_clf_forward.1} parent=47 // pred_check_branch
              %1099 = sbr.rel (0) target = $region52
            $region51: #{base_clf_forward.1} parent=47 // pred_region
              // Predicated region
              $region71: #{base_clf_forward.1} parent=51 // pred_check
                _
              $region72: #{base_clf_forward.1} parent=51 // pred_check_branch
                %1154 = sbr.rel (0) target = $region74
              $region73: #{base_clf_forward.1} parent=51 // pred_region
                %s1155 = sshrl.u32 %s1090, 2
                // While loop
                $region75: #{base_clf_forward.1} parent=73 // loop_pre_header
                  _
                $region76: #{base_clf_forward.1} parent=73 // loop_header
                  %s1157 = sphi 0, %s1159
                  %p1158 = scmp.ge.s32.totalorder %s1157, %s1155
                  %s1162 = sphi 0, %s1175
                  %s1163 = sphi %s1075, %s1178
                  %s1164 = sphi %s1094, %s1179
                $region77: #{base_clf_forward.1} parent=73 // loop_header_branch
                  %1161 = sbr.rel (%p1158) target = $region81
                $region78: #{base_clf_forward.1} parent=73 // loop_body
                  %v1165 = vld [vmem:[%s1163] sm:$0xff]
                  %1166 = vst [vmem:[%s1164] sm:$0xff] %v1165
                  %v1167 = vld [vmem:[%s1163 + $0x8] sm:$0xff]
                  %1168 = vst [vmem:[%s1164 + $0x8] sm:$0xff] %v1167
                  %v1169 = vld [vmem:[%s1163 + $0x10] sm:$0xff]
                  %1170 = vst [vmem:[%s1164 + $0x10] sm:$0xff] %v1169
                  %v1171 = vld [vmem:[%s1163 + $0x18] sm:$0xff]
                  %1172 = vst [vmem:[%s1164 + $0x18] sm:$0xff] %v1171
                  %s1173 = sadd.s32 1, %s1162
                  %p1174 = scmp.ge.s32.totalorder %s1173, %s1155
                  %s1175 = scalar_select %p1174, 0, %s1173
                  %s1176 = smul.u32 %s1175, 32
                  %s1177 = smul.u32 %s1175, 32
                  %s1178 = scalar_lea.vmem %s1075, %s1176 [#allocation2]
                  %s1179 = scalar_lea.vmem %s1094, %s1177
                $region79: #{base_clf_forward.1} parent=73 // loop_footer
                  %s1159 = sadd.s32 %s1157, 1
                $region80: #{base_clf_forward.1} parent=73 // loop_footer_branch
                  %1156 = sbr.rel target = $region76
                $region81: #{base_clf_forward.1} parent=73 // loop_exit
                  _
                %s1180 = sshrl.u32 %s1090, 2
                %s1181 = sand.u32 %s1090, 3
                %s1182 = smul.u32 %s1180, 4
                %s1183 = smul.u32 8, %s1182
                %s1184 = scalar_lea.vmem %s1075, %s1183 [#allocation2]
                %s1185 = smul.u32 8, %s1182
                %s1186 = scalar_lea.vmem %s1094, %s1185
                // While loop
                $region82: #{base_clf_forward.1} parent=73 // loop_pre_header
                  _
                $region83: #{base_clf_forward.1} parent=73 // loop_header
                  %s1188 = sphi 0, %s1190
                  %p1189 = scmp.ge.s32.totalorder %s1188, %s1181
                  %s1193 = sphi 0, %s1200
                  %s1194 = sphi %s1184, %s1203
                  %s1195 = sphi %s1186, %s1204
                $region84: #{base_clf_forward.1} parent=73 // loop_header_branch
                  %1192 = sbr.rel (%p1189) target = $region88
                $region85: #{base_clf_forward.1} parent=73 // loop_body
                  %v1196 = vld [vmem:[%s1194] sm:$0xff]
                  %1197 = vst [vmem:[%s1195] sm:$0xff] %v1196
                  %s1198 = sadd.s32 1, %s1193
                  %p1199 = scmp.ge.s32.totalorder %s1198, %s1181
                  %s1200 = scalar_select %p1199, 0, %s1198
                  %s1201 = smul.u32 %s1200, 8
                  %s1202 = smul.u32 %s1200, 8
                  %s1203 = scalar_lea.vmem %s1184, %s1201 [#allocation2]
                  %s1204 = scalar_lea.vmem %s1186, %s1202
                $region86: #{base_clf_forward.1} parent=73 // loop_footer
                  %s1190 = sadd.s32 %s1188, 1
                $region87: #{base_clf_forward.1} parent=73 // loop_footer_branch
                  %1187 = sbr.rel target = $region83
                $region88: #{base_clf_forward.1} parent=73 // loop_exit
                  _
              $region74: #{base_clf_forward.1} parent=51 // pred_fallthru
                _
              // Predicated region
              $region89: #{base_clf_forward.1} parent=51 // pred_check
                _
              $region90: #{base_clf_forward.1} parent=51 // pred_check_branch
                %1206 = sbr.rel target = $region92
              $region91: #{base_clf_forward.1} parent=51 // pred_region
                _
              $region92: #{base_clf_forward.1} parent=51 // pred_fallthru
                _
            $region52: #{base_clf_forward.1} parent=47 // pred_fallthru
              _
            // Predicated region
            $region53: #{base_clf_forward.1} parent=47 // pred_check
              _
            $region54: #{base_clf_forward.1} parent=47 // pred_check_branch
              %1101 = sbr.rel target = $region56
            $region55: #{base_clf_forward.1} parent=47 // pred_region
              %s1103 = sshrl.u32 %s1090, 2
              // While loop
              $region57: #{base_clf_forward.1} parent=55 // loop_pre_header
                _
              $region58: #{base_clf_forward.1} parent=55 // loop_header
                %s1105 = sphi 0, %s1107
                %p1106 = scmp.ge.s32.totalorder %s1105, %s1103
                %s1110 = sphi 0, %s1123
                %s1111 = sphi %s1075, %s1126
                %s1112 = sphi %s1094, %s1127
              $region59: #{base_clf_forward.1} parent=55 // loop_header_branch
                %1109 = sbr.rel (%p1106) target = $region63
              $region60: #{base_clf_forward.1} parent=55 // loop_body
                %v1113 = vld [vmem:[%s1111] sm:$0xff]
                %1114 = vst [vmem:[%s1112] sm:$0xff] %v1113
                %v1115 = vld [vmem:[%s1111 + $0x8] sm:$0xff]
                %1116 = vst [vmem:[%s1112 + $0x8] sm:$0xff] %v1115
                %v1117 = vld [vmem:[%s1111 + $0x10] sm:$0xff]
                %1118 = vst [vmem:[%s1112 + $0x10] sm:$0xff] %v1117
                %v1119 = vld [vmem:[%s1111 + $0x18] sm:$0xff]
                %1120 = vst [vmem:[%s1112 + $0x18] sm:$0xff] %v1119
                %s1121 = sadd.s32 1, %s1110
                %p1122 = scmp.ge.s32.totalorder %s1121, %s1103
                %s1123 = scalar_select %p1122, 0, %s1121
                %s1124 = smul.u32 %s1123, 32
                %s1125 = smul.u32 %s1123, 32
                %s1126 = scalar_lea.vmem %s1075, %s1124 [#allocation2]
                %s1127 = scalar_lea.vmem %s1094, %s1125
              $region61: #{base_clf_forward.1} parent=55 // loop_footer
                %s1107 = sadd.s32 %s1105, 1
              $region62: #{base_clf_forward.1} parent=55 // loop_footer_branch
                %1104 = sbr.rel target = $region58
              $region63: #{base_clf_forward.1} parent=55 // loop_exit
                _
              %s1128 = sshrl.u32 %s1090, 2
              %s1129 = sand.u32 %s1090, 3
              %s1130 = smul.u32 %s1128, 4
              %s1131 = smul.u32 8, %s1130
              %s1132 = scalar_lea.vmem %s1075, %s1131 [#allocation2]
              %s1133 = smul.u32 8, %s1130
              %s1134 = scalar_lea.vmem %s1094, %s1133
              // While loop
              $region64: #{base_clf_forward.1} parent=55 // loop_pre_header
                _
              $region65: #{base_clf_forward.1} parent=55 // loop_header
                %s1136 = sphi 0, %s1138
                %p1137 = scmp.ge.s32.totalorder %s1136, %s1129
                %s1141 = sphi 0, %s1148
                %s1142 = sphi %s1132, %s1151
                %s1143 = sphi %s1134, %s1152
              $region66: #{base_clf_forward.1} parent=55 // loop_header_branch
                %1140 = sbr.rel (%p1137) target = $region70
              $region67: #{base_clf_forward.1} parent=55 // loop_body
                %v1144 = vld [vmem:[%s1142] sm:$0xff]
                %1145 = vst [vmem:[%s1143] sm:$0xff] %v1144
                %s1146 = sadd.s32 1, %s1141
                %p1147 = scmp.ge.s32.totalorder %s1146, %s1129
                %s1148 = scalar_select %p1147, 0, %s1146
                %s1149 = smul.u32 %s1148, 8
                %s1150 = smul.u32 %s1148, 8
                %s1151 = scalar_lea.vmem %s1132, %s1149 [#allocation2]
                %s1152 = scalar_lea.vmem %s1134, %s1150
              $region68: #{base_clf_forward.1} parent=55 // loop_footer
                %s1138 = sadd.s32 %s1136, 1
              $region69: #{base_clf_forward.1} parent=55 // loop_footer_branch
                %1135 = sbr.rel target = $region65
              $region70: #{base_clf_forward.1} parent=55 // loop_exit
                _
            $region56: #{base_clf_forward.1} parent=47 // pred_fallthru
              _
          $region48: #{base_clf_forward.1} parent=43 // pred_fallthru
            _
          %1207 = vnop
        $region44: #{base_clf_forward.1} parent=39 // pred_fallthru
          _
        // Predicated region
        $region93: #{base_clf_forward.1} parent=39 // pred_check
          %p1208 = pneg %p178
        $region94: #{base_clf_forward.1} parent=39 // pred_check_branch
          %1210 = sbr.rel (%p1208) target = $region96
        $region95: #{base_clf_forward.1} parent=39 // pred_region
          %s1211 = smul.u32 4, %s19
          %s1212 = ssub.s32 6, %s1211
          %p1213 = scmp.lt.s32.totalorder %s1212, 4
          %s1214 = scalar_select %p1213, %s1212, 4
          %s1215 = smul.u32 32, %s1214
          %p1216 = scmp.ne.s32.totalorder 0, %s1215
          %s1217 = smul.addr %s1211, 2
          %s1218 = scalar_lea.vmem %s6, %s1217
          // Predicated region
          $region97: #{base_clf_forward.1} parent=95 // pred_check
            %p1219 = pneg %p1216
          $region98: #{base_clf_forward.1} parent=95 // pred_check_branch
            %1221 = sbr.rel (%p1219) target = $region100
          $region99: #{base_clf_forward.1} parent=95 // pred_region
            // Predicated region
            $region101: #{base_clf_forward.1} parent=99 // pred_check
              _
            $region102: #{base_clf_forward.1} parent=99 // pred_check_branch
              %1223 = sbr.rel target = $region104
            $region103: #{base_clf_forward.1} parent=99 // pred_region
              // Predicated region
              $region123: #{base_clf_forward.1} parent=103 // pred_check
                _
              $region124: #{base_clf_forward.1} parent=103 // pred_check_branch
                %1278 = sbr.rel (0) target = $region126
              $region125: #{base_clf_forward.1} parent=103 // pred_region
                %s1280 = sshrl.u32 %s1214, 2
                // While loop
                $region127: #{base_clf_forward.1} parent=125 // loop_pre_header
                  _
                $region128: #{base_clf_forward.1} parent=125 // loop_header
                  %s1282 = sphi 0, %s1284
                  %p1283 = scmp.ge.s32.totalorder %s1282, %s1280
                  %s1287 = sphi 0, %s1300
                  %s1288 = sphi %s1079, %s1303
                  %s1289 = sphi %s1218, %s1304
                $region129: #{base_clf_forward.1} parent=125 // loop_header_branch
                  %1286 = sbr.rel (%p1283) target = $region133
                $region130: #{base_clf_forward.1} parent=125 // loop_body
                  %v1290 = vld [vmem:[%s1288] sm:$0x3]
                  %1291 = vst [vmem:[%s1289] sm:$0x3] %v1290
                  %v1292 = vld [vmem:[%s1288 + $0x2] sm:$0x3]
                  %1293 = vst [vmem:[%s1289 + $0x2] sm:$0x3] %v1292
                  %v1294 = vld [vmem:[%s1288 + $0x4] sm:$0x3]
                  %1295 = vst [vmem:[%s1289 + $0x4] sm:$0x3] %v1294
                  %v1296 = vld [vmem:[%s1288 + $0x6] sm:$0x3]
                  %1297 = vst [vmem:[%s1289 + $0x6] sm:$0x3] %v1296
                  %s1298 = sadd.s32 1, %s1287
                  %p1299 = scmp.ge.s32.totalorder %s1298, %s1280
                  %s1300 = scalar_select %p1299, 0, %s1298
                  %s1301 = smul.u32 %s1300, 8
                  %s1302 = smul.u32 %s1300, 8
                  %s1303 = scalar_lea.vmem %s1079, %s1301 [#allocation3]
                  %s1304 = scalar_lea.vmem %s1218, %s1302
                $region131: #{base_clf_forward.1} parent=125 // loop_footer
                  %s1284 = sadd.s32 %s1282, 1
                $region132: #{base_clf_forward.1} parent=125 // loop_footer_branch
                  %1281 = sbr.rel target = $region128
                $region133: #{base_clf_forward.1} parent=125 // loop_exit
                  _
                %s1305 = sshrl.u32 %s1214, 2
                %s1306 = sand.u32 %s1214, 3
                %s1307 = smul.u32 %s1305, 4
                %s1308 = smul.u32 2, %s1307
                %s1309 = scalar_lea.vmem %s1079, %s1308 [#allocation3]
                %s1310 = smul.u32 2, %s1307
                %s1311 = scalar_lea.vmem %s1218, %s1310
                // While loop
                $region134: #{base_clf_forward.1} parent=125 // loop_pre_header
                  _
                $region135: #{base_clf_forward.1} parent=125 // loop_header
                  %s1313 = sphi 0, %s1315
                  %p1314 = scmp.ge.s32.totalorder %s1313, %s1306
                  %s1318 = sphi 0, %s1325
                  %s1319 = sphi %s1309, %s1328
                  %s1320 = sphi %s1311, %s1329
                $region136: #{base_clf_forward.1} parent=125 // loop_header_branch
                  %1317 = sbr.rel (%p1314) target = $region140
                $region137: #{base_clf_forward.1} parent=125 // loop_body
                  %v1321 = vld [vmem:[%s1319] sm:$0x3]
                  %1322 = vst [vmem:[%s1320] sm:$0x3] %v1321
                  %s1323 = sadd.s32 1, %s1318
                  %p1324 = scmp.ge.s32.totalorder %s1323, %s1306
                  %s1325 = scalar_select %p1324, 0, %s1323
                  %s1326 = smul.u32 %s1325, 2
                  %s1327 = smul.u32 %s1325, 2
                  %s1328 = scalar_lea.vmem %s1309, %s1326 [#allocation3]
                  %s1329 = scalar_lea.vmem %s1311, %s1327
                $region138: #{base_clf_forward.1} parent=125 // loop_footer
                  %s1315 = sadd.s32 %s1313, 1
                $region139: #{base_clf_forward.1} parent=125 // loop_footer_branch
                  %1312 = sbr.rel target = $region135
                $region140: #{base_clf_forward.1} parent=125 // loop_exit
                  _
              $region126: #{base_clf_forward.1} parent=103 // pred_fallthru
                _
            $region104: #{base_clf_forward.1} parent=99 // pred_fallthru
              _
            // Predicated region
            $region105: #{base_clf_forward.1} parent=99 // pred_check
              _
            $region106: #{base_clf_forward.1} parent=99 // pred_check_branch
              %1225 = sbr.rel (0) target = $region108
            $region107: #{base_clf_forward.1} parent=99 // pred_region
              %s1227 = sshrl.u32 %s1214, 2
              // While loop
              $region109: #{base_clf_forward.1} parent=107 // loop_pre_header
                _
              $region110: #{base_clf_forward.1} parent=107 // loop_header
                %s1229 = sphi 0, %s1231
                %p1230 = scmp.ge.s32.totalorder %s1229, %s1227
                %s1234 = sphi 0, %s1247
                %s1235 = sphi %s1079, %s1250
                %s1236 = sphi %s1218, %s1251
              $region111: #{base_clf_forward.1} parent=107 // loop_header_branch
                %1233 = sbr.rel (%p1230) target = $region115
              $region112: #{base_clf_forward.1} parent=107 // loop_body
                %v1237 = vld [vmem:[%s1235] sm:$0x3]
                %1238 = vst [vmem:[%s1236] sm:$0x3] %v1237
                %v1239 = vld [vmem:[%s1235 + $0x2] sm:$0x3]
                %1240 = vst [vmem:[%s1236 + $0x2] sm:$0x3] %v1239
                %v1241 = vld [vmem:[%s1235 + $0x4] sm:$0x3]
                %1242 = vst [vmem:[%s1236 + $0x4] sm:$0x3] %v1241
                %v1243 = vld [vmem:[%s1235 + $0x6] sm:$0x3]
                %1244 = vst [vmem:[%s1236 + $0x6] sm:$0x3] %v1243
                %s1245 = sadd.s32 1, %s1234
                %p1246 = scmp.ge.s32.totalorder %s1245, %s1227
                %s1247 = scalar_select %p1246, 0, %s1245
                %s1248 = smul.u32 %s1247, 8
                %s1249 = smul.u32 %s1247, 8
                %s1250 = scalar_lea.vmem %s1079, %s1248 [#allocation3]
                %s1251 = scalar_lea.vmem %s1218, %s1249
              $region113: #{base_clf_forward.1} parent=107 // loop_footer
                %s1231 = sadd.s32 %s1229, 1
              $region114: #{base_clf_forward.1} parent=107 // loop_footer_branch
                %1228 = sbr.rel target = $region110
              $region115: #{base_clf_forward.1} parent=107 // loop_exit
                _
              %s1252 = sshrl.u32 %s1214, 2
              %s1253 = sand.u32 %s1214, 3
              %s1254 = smul.u32 %s1252, 4
              %s1255 = smul.u32 2, %s1254
              %s1256 = scalar_lea.vmem %s1079, %s1255 [#allocation3]
              %s1257 = smul.u32 2, %s1254
              %s1258 = scalar_lea.vmem %s1218, %s1257
              // While loop
              $region116: #{base_clf_forward.1} parent=107 // loop_pre_header
                _
              $region117: #{base_clf_forward.1} parent=107 // loop_header
                %s1260 = sphi 0, %s1262
                %p1261 = scmp.ge.s32.totalorder %s1260, %s1253
                %s1265 = sphi 0, %s1272
                %s1266 = sphi %s1256, %s1275
                %s1267 = sphi %s1258, %s1276
              $region118: #{base_clf_forward.1} parent=107 // loop_header_branch
                %1264 = sbr.rel (%p1261) target = $region122
              $region119: #{base_clf_forward.1} parent=107 // loop_body
                %v1268 = vld [vmem:[%s1266] sm:$0x3]
                %1269 = vst [vmem:[%s1267] sm:$0x3] %v1268
                %s1270 = sadd.s32 1, %s1265
                %p1271 = scmp.ge.s32.totalorder %s1270, %s1253
                %s1272 = scalar_select %p1271, 0, %s1270
                %s1273 = smul.u32 %s1272, 2
                %s1274 = smul.u32 %s1272, 2
                %s1275 = scalar_lea.vmem %s1256, %s1273 [#allocation3]
                %s1276 = scalar_lea.vmem %s1258, %s1274
              $region120: #{base_clf_forward.1} parent=107 // loop_footer
                %s1262 = sadd.s32 %s1260, 1
              $region121: #{base_clf_forward.1} parent=107 // loop_footer_branch
                %1259 = sbr.rel target = $region117
              $region122: #{base_clf_forward.1} parent=107 // loop_exit
                _
            $region108: #{base_clf_forward.1} parent=99 // pred_fallthru
              _
          $region100: #{base_clf_forward.1} parent=95 // pred_fallthru
            _
          %1330 = vnop
        $region96: #{base_clf_forward.1} parent=39 // pred_fallthru
          _
        // Predicated region
        $region141: #{base_clf_forward.1} parent=39 // pred_check
          %p1331 = pneg %p204
        $region142: #{base_clf_forward.1} parent=39 // pred_check_branch
          %1333 = sbr.rel (%p1331) target = $region144
        $region143: #{base_clf_forward.1} parent=39 // pred_region
          _
        $region144: #{base_clf_forward.1} parent=39 // pred_fallthru
          _
      $region40: #{base_clf_forward.1} parent=5 // pred_fallthru
        _
      %p1334 = scmp.le.s32.totalorder 2, %s14
      // Predicated region
      $region145: #{base_clf_forward.1} parent=5 // pred_check
        %p1335 = pneg %p1334
      $region146: #{base_clf_forward.1} parent=5 // pred_check_branch
        %1337 = sbr.rel (%p1335) target = $region148
      $region147: #{base_clf_forward.1} parent=5 // pred_region
        %s1338 = ssub.s32 %s14, 2
        // Predicated region
        $region149: #{base_clf_forward.1} parent=147 // pred_check
          %p1339 = pneg %p158
        $region150: #{base_clf_forward.1} parent=147 // pred_check_branch
          %1341 = sbr.rel (%p1339) target = $region152
        $region151: #{base_clf_forward.1} parent=147 // pred_region
          %s1342 = sand.u32 %s143, 1
          %s1343 = sand.u32 %s143, 1
          %s1344 = smul.addr %s1343, 32
          %s1345 = scalar_lea.vmem [#allocation2], %s1344
        $region152: #{base_clf_forward.1} parent=147 // pred_fallthru
          _
        // Predicated region
        $region153: #{base_clf_forward.1} parent=147 // pred_check
          %p1346 = pneg %p184
        $region154: #{base_clf_forward.1} parent=147 // pred_check_branch
          %1348 = sbr.rel (%p1346) target = $region156
        $region155: #{base_clf_forward.1} parent=147 // pred_region
          %s1349 = sand.u32 %s169, 1
          %s1350 = sand.u32 %s169, 1
          %s1351 = smul.addr %s1350, 8
          %s1352 = scalar_lea.vmem [#allocation3], %s1351
        $region156: #{base_clf_forward.1} parent=147 // pred_fallthru
          _
        // Predicated region
        $region157: #{base_clf_forward.1} parent=147 // pred_check
          %p1353 = pneg %p210
        $region158: #{base_clf_forward.1} parent=147 // pred_check_branch
          %1355 = sbr.rel (%p1353) target = $region160
        $region159: #{base_clf_forward.1} parent=147 // pred_region
          %p1356 = scmp.lt.s32.totalorder %s20, 1
          %s1357 = scalar_select %p1356, %s20, 1
          %s1358 = smul.addr %s1357, 8
          %s1359 = scalar_lea.vmem %s7, %s1358
        $region160: #{base_clf_forward.1} parent=147 // pred_fallthru
          _
      $region148: #{base_clf_forward.1} parent=5 // pred_fallthru
        _
    $region6: #{base_clf_forward.1} parent=1 // loop_footer
      %s18 = sadd.s32 1, %s14
    $region7: #{base_clf_forward.1} parent=1 // loop_footer_branch
      %13 = sbr.rel target = $region3
    $region8: #{base_clf_forward.1} parent=1 // loop_exit
      _

</llo_original>
